<compile_context>
chip_gen: v7x
topology: tpu7x:2x2x1
jax: 0.10.0
libtpu: 0.0.40
codegen_flags: <defaults>
</compile_context>

<pallas_src>
import math

import jax
import jax.numpy as jnp
from jax.experimental import pallas as pl
from jax.experimental.pallas import tpu as pltpu

# ---- synthetic small-PLM dimensions ----
B, S, H = 2, 8, 32          # batch, sequence length, hidden size
NH, HD = 2, 16              # num heads, head dim (NH*HD == H)
FFN = 64                    # feed-forward intermediate size
VOCAB = 100
NUM_LAYERS = 2
NUM_LABELS = 1              # output-head VPU path below assumes NUM_LABELS == 1
BS = B * S                  # flattened token axis
LN_EPS = 1e-12
SCALE = 1.0 / math.sqrt(HD)
GELU_C = 0.7978845608028654  # sqrt(2/pi)

# ---- f32 vector-slab row layout (every bias / LN / head vector = one row) ----
VEC_W = max(H, FFN)                               # 64; rows are left-aligned, zero-padded
ROW_EMB_G, ROW_EMB_B = 0, 1
ROW_LAYER0 = 2
# per-layer rows: +3*h+{0,1,2} = (bq, bk, bv) for head h, then:
R_BO, R_LN1G, R_LN1B, R_B1, R_B2, R_LN2G, R_LN2B = 6, 7, 8, 9, 10, 11, 12
ROWS_PER_LAYER = 13
ROW_OUT_W = ROW_LAYER0 + NUM_LAYERS * ROWS_PER_LAYER
ROW_OUT_B = ROW_OUT_W + 1
NVEC = ROW_OUT_B + 1

# dot_general dimension numbers for A @ B^T (contract last dim of both operands)
TRANS_B = (((1,), (1,)), ((), ()))


def _spec(shape):
    # full-array block, single grid step
    n = len(shape)
    return pl.BlockSpec(shape, lambda *_: (0,) * n)


# ---------------- fused forward kernel ----------------

def _plm_forward_kernel(x_ref, bias_ref, pool_ref, wattn_ref, wffn_ref, vec_ref, o_ref):
    f32, bf16 = jnp.float32, jnp.bfloat16

    def vec(r, width):
        # (1, width) f32 view of the packed vector slab; lane offset 0 -> no relayout
        return vec_ref[r:r + 1, 0:width]

    def layernorm(y, g, b):
        mu = jnp.mean(y, axis=-1, keepdims=True)
        var = jnp.mean(jnp.square(y - mu), axis=-1, keepdims=True)
        return (y - mu) * jax.lax.rsqrt(var + LN_EPS) * g + b

    # embedding LayerNorm (gather + positional add done in the JAX wrapper)
    xf = layernorm(x_ref[...], vec(ROW_EMB_G, H), vec(ROW_EMB_B, H))      # (BS, H) f32
    bias = bias_ref[...]                                                  # (BS, BS) block-diag mask

    for l in range(NUM_LAYERS):                                           # statically unrolled
        base = ROW_LAYER0 + l * ROWS_PER_LAYER
        xf16 = xf.astype(bf16)          # one cast, reused by all six QKV matmuls of this layer

        attn = None
        for h in range(NH):                                               # statically unrolled
            widx = (l * NH + h) * 4     # static leading-dim index into the bf16 weight slab
            rb = base + 3 * h
            q = jnp.dot(xf16, wattn_ref[widx + 0], preferred_element_type=f32) + vec(rb + 0, HD)
            k = jnp.dot(xf16, wattn_ref[widx + 1], preferred_element_type=f32) + vec(rb + 1, HD)
            v = jnp.dot(xf16, wattn_ref[widx + 2], preferred_element_type=f32) + vec(rb + 2, HD)
            # flattened scores over the B*S key axis; cross-batch / masked keys get -1e9
            # (SCALE is already folded into wq / bq)
            s = jax.lax.dot_general(q.astype(bf16), k.astype(bf16), TRANS_B,
                                    preferred_element_type=f32) + bias    # (BS, BS)
            s = s - jnp.max(s, axis=-1, keepdims=True)
            p = jnp.exp(s)
            p = p * pl.reciprocal(jnp.sum(p, axis=-1, keepdims=True), approx=True)
            ctx = jnp.dot(p.astype(bf16), v.astype(bf16), preferred_element_type=f32)  # (BS, HD)
            # per-head output projection (wo stored transposed -> A @ B^T, no head concat)
            oh = jax.lax.dot_general(ctx.astype(bf16), wattn_ref[widx + 3], TRANS_B,
                                     preferred_element_type=f32)          # (BS, H)
            attn = oh if attn is None else attn + oh

        attn = attn + vec(base + R_BO, H)
        xf = layernorm(attn + xf, vec(base + R_LN1G, H), vec(base + R_LN1B, H))

        # feed-forward (w1 stored transposed); tanh-GELU stays on the EUP slot
        xf16 = xf.astype(bf16)
        ff = jax.lax.dot_general(xf16, wffn_ref[l * 2 + 0], TRANS_B,
                                 preferred_element_type=f32) + vec(base + R_B1, FFN)   # (BS, FFN)
        ff = 0.5 * ff * (1.0 + jnp.tanh(GELU_C * (ff + 0.044715 * ff * ff * ff)))
        ff = jnp.dot(ff.astype(bf16), wffn_ref[l * 2 + 1],
                     preferred_element_type=f32) + vec(base + R_B2, H)                 # (BS, H)
        xf = layernorm(ff + xf, vec(base + R_LN2G, H), vec(base + R_LN2B, H))

    # masked mean pooling as ONE matmul: mask and 1/denominator are folded into pool_ref
    pooled = jnp.dot(pool_ref[...], xf, preferred_element_type=f32)       # (B, H) f32
    # dropout is identity at inference; NUM_LABELS == 1 head on the VPU (mul + lane reduce)
    y = jnp.sum(pooled * vec(ROW_OUT_W, H), axis=-1, keepdims=True) + vec(ROW_OUT_B, NUM_LABELS)
    o_ref[...] = y.astype(o_ref.dtype)


# ---------------- parameters (packed into 3 slabs) ----------------

def init_params(key):
    ks = jax.random.split(key, 16)

    def w(k, shape, scale=0.02):
        return jax.random.normal(k, shape, jnp.float32) * scale

    word_emb = w(ks[0], (VOCAB, H))
    pos_emb = w(ks[1], (S, H))

    # per-layer, per-head attention weights (SCALE folded into wq / bq)
    wq = w(ks[2], (NUM_LAYERS, NH, H, HD)) * SCALE
    wk = w(ks[3], (NUM_LAYERS, NH, H, HD))
    wv = w(ks[4], (NUM_LAYERS, NH, H, HD))
    wo = w(ks[5], (NUM_LAYERS, NH, HD, H))      # per-head row blocks of the (H,H) out-proj
    w1 = w(ks[6], (NUM_LAYERS, H, FFN))
    w2 = w(ks[7], (NUM_LAYERS, FFN, H))

    bq = w(ks[8], (NUM_LAYERS, NH, HD)) * SCALE
    bk = w(ks[9], (NUM_LAYERS, NH, HD))
    bv = w(ks[10], (NUM_LAYERS, NH, HD))
    bo = w(ks[11], (NUM_LAYERS, H))
    b1 = w(ks[12], (NUM_LAYERS, FFN))
    b2 = w(ks[13], (NUM_LAYERS, H))
    out_w = w(ks[14], (H,))
    out_b = w(ks[15], (NUM_LABELS,))

    emb_g = jnp.ones((H,), jnp.float32)
    emb_b = jnp.zeros((H,), jnp.float32)
    ln1_g = jnp.ones((NUM_LAYERS, H), jnp.float32)
    ln1_b = jnp.zeros((NUM_LAYERS, H), jnp.float32)
    ln2_g = jnp.ones((NUM_LAYERS, H), jnp.float32)
    ln2_b = jnp.zeros((NUM_LAYERS, H), jnp.float32)

    # bf16 slab 1: all attention weights, indexed by one static leading dim
    # order per (layer, head): [wq*SCALE, wk, wv, wo^T]
    w_attn = jnp.stack([wq, wk, wv, jnp.swapaxes(wo, -1, -2)], axis=2)      # (L, NH, 4, H, HD)
    w_attn = w_attn.reshape(NUM_LAYERS * NH * 4, H, HD).astype(jnp.bfloat16)

    # bf16 slab 2: FFN weights, w1 stored transposed so both entries are (FFN, H)
    w_ffn = jnp.stack([jnp.swapaxes(w1, -1, -2), w2], axis=1)               # (L, 2, FFN, H)
    w_ffn = w_ffn.reshape(NUM_LAYERS * 2, FFN, H).astype(jnp.bfloat16)

    # f32 slab 3: every bias / LN / head vector as one left-aligned, zero-padded row
    def row(v):
        return jnp.pad(v, (0, VEC_W - v.shape[0]))

    rows = [row(emb_g), row(emb_b)]
    for l in range(NUM_LAYERS):
        for h in range(NH):
            rows += [row(bq[l, h]), row(bk[l, h]), row(bv[l, h])]
        rows += [row(bo[l]), row(ln1_g[l]), row(ln1_b[l]),
                 row(b1[l]), row(b2[l]), row(ln2_g[l]), row(ln2_b[l])]
    rows += [row(out_w), row(out_b)]
    assert len(rows) == NVEC
    vecs = jnp.stack(rows)                                                  # (NVEC, VEC_W) f32

    return {"word_emb": word_emb, "pos_emb": pos_emb,
            "w_attn": w_attn, "w_ffn": w_ffn, "vecs": vecs}


# ---------------- forward wrapper ----------------

def plm_regressor_forward(params, input_ids, attention_mask):
    # embedding gather + positional add stay in plain JAX (glue)
    x = (params["word_emb"][input_ids] + params["pos_emb"][None, :, :]).reshape(BS, H)

    mask_f = attention_mask.astype(jnp.float32)                             # (B, S)

    # block-diagonal additive key mask over the flattened B*S axis
    block_diag = jnp.kron(jnp.eye(B, dtype=jnp.float32), jnp.ones((S, S), jnp.float32))
    valid = block_diag * mask_f.reshape(1, BS)
    attn_bias = (valid - 1.0) * 1e9                                         # 0 / -1e9, (BS, BS)

    # pooling matrix: mask rows placed block-diagonally with the sum(mask) denominator
    # folded in (no clamp — matches the PyTorch reference exactly)
    denom = jnp.sum(mask_f, axis=-1, keepdims=True)                         # (B, 1)
    pool_mat = (jnp.eye(B, dtype=jnp.float32)[:, :, None]
                * (mask_f / denom)[:, None, :]).reshape(B, BS)              # (B, B*S)

    args = (x, attn_bias, pool_mat, params["w_attn"], params["w_ffn"], params["vecs"])

    return pl.pallas_call(
        _plm_forward_kernel,
        grid=(1,),                                   # single grid step; everything VMEM-resident
        in_specs=[_spec(a.shape) for a in args],
        out_specs=_spec((B, NUM_LABELS)),
        out_shape=jax.ShapeDtypeStruct((B, NUM_LABELS), jnp.float32),
        compiler_params=pltpu.CompilerParams(dimension_semantics=("arbitrary",)),
    )(*args)


if __name__ == "__main__":
    key = jax.random.PRNGKey(0)
    pkey, ikey = jax.random.split(key)
    params = init_params(pkey)

    input_ids = jax.random.randint(ikey, (B, S), 0, VOCAB, dtype=jnp.int32)
    attention_mask = jnp.array([[1, 1, 1, 1, 1, 1, 0, 0],
                                [1, 1, 1, 1, 0, 0, 0, 0]], dtype=jnp.int32)

    out = jax.jit(plm_regressor_forward)(params, input_ids, attention_mask)
    jax.block_until_ready(out)
    assert out.shape == (B, NUM_LABELS) and out.dtype == jnp.float32
    assert bool(jnp.all(jnp.isfinite(out)))
    print("KERNEL_OK")
</pallas_src>

<mosaic_0001>
module attributes {stable_mosaic.version = 11 : i64} {
  func.func @_plm_forward_kernel(%arg0: i32, %arg1: memref<16x32xf32, #tpu.memory_space<vmem>>, %arg2: memref<16x16xf32, #tpu.memory_space<vmem>>, %arg3: memref<2x16xf32, #tpu.memory_space<vmem>>, %arg4: memref<16x32x16xbf16, #tpu.memory_space<vmem>>, %arg5: memref<4x64x32xbf16, #tpu.memory_space<vmem>>, %arg6: memref<30x64xf32, #tpu.memory_space<vmem>>, %arg7: memref<2x1xf32, #tpu.memory_space<vmem>>) attributes {dimension_semantics = [#tpu.dimension_semantics<arbitrary>], iteration_bounds = array<i64: 1>, scalar_prefetch = 0 : i64, scratch_operands = 0 : i64, tpu.core_type = #tpu.core_type<tc>, window_params = [{pipeline_mode = #tpu.pipeline_mode<synchronous>, transform_indices = @transform_0, window_bounds = array<i64: 16, 32>}, {pipeline_mode = #tpu.pipeline_mode<synchronous>, transform_indices = @transform_1, window_bounds = array<i64: 16, 16>}, {pipeline_mode = #tpu.pipeline_mode<synchronous>, transform_indices = @transform_2, window_bounds = array<i64: 2, 16>}, {pipeline_mode = #tpu.pipeline_mode<synchronous>, transform_indices = @transform_3, window_bounds = array<i64: 16, 32, 16>}, {pipeline_mode = #tpu.pipeline_mode<synchronous>, transform_indices = @transform_4, window_bounds = array<i64: 4, 64, 32>}, {pipeline_mode = #tpu.pipeline_mode<synchronous>, transform_indices = @transform_5, window_bounds = array<i64: 30, 64>}, {pipeline_mode = #tpu.pipeline_mode<synchronous>, transform_indices = @transform_6, window_bounds = array<i64: 2, 1>}]} {
    %c0 = arith.constant 0 : index
    %c0_0 = arith.constant 0 : index
    %0 = vector.load %arg1[%c0, %c0_0] : memref<16x32xf32, #tpu.memory_space<vmem>>, vector<16x32xf32>
    %c0_1 = arith.constant 0 : index
    %c0_2 = arith.constant 0 : index
    %1 = vector.load %arg6[%c0_1, %c0_2] : memref<30x64xf32, #tpu.memory_space<vmem>>, vector<1x32xf32>
    %c1 = arith.constant 1 : index
    %c0_3 = arith.constant 0 : index
    %2 = vector.load %arg6[%c1, %c0_3] : memref<30x64xf32, #tpu.memory_space<vmem>>, vector<1x32xf32>
    %cst = arith.constant dense<0.000000e+00> : vector<16xf32>
    %3 = vector.multi_reduction <add>, %0, %cst [1] : vector<16x32xf32> to vector<16xf32>
    %4 = vector.shape_cast %3 : vector<16xf32> to vector<16x1xf32>
    %cst_4 = arith.constant 3.200000e+01 : f32
    %5 = vector.broadcast %cst_4 : f32 to vector<16x1xf32>
    %6 = arith.divf %4, %5 : vector<16x1xf32>
    %7 = vector.broadcast %6 : vector<16x1xf32> to vector<16x32xf32>
    %8 = arith.subf %0, %7 : vector<16x32xf32>
    %9 = arith.mulf %8, %8 : vector<16x32xf32>
    %cst_5 = arith.constant dense<0.000000e+00> : vector<16xf32>
    %10 = vector.multi_reduction <add>, %9, %cst_5 [1] : vector<16x32xf32> to vector<16xf32>
    %11 = vector.shape_cast %10 : vector<16xf32> to vector<16x1xf32>
    %cst_6 = arith.constant 3.200000e+01 : f32
    %12 = vector.broadcast %cst_6 : f32 to vector<16x1xf32>
    %13 = arith.divf %11, %12 : vector<16x1xf32>
    %14 = vector.broadcast %6 : vector<16x1xf32> to vector<16x32xf32>
    %15 = arith.subf %0, %14 : vector<16x32xf32>
    %cst_7 = arith.constant 9.99999996E-13 : f32
    %16 = vector.broadcast %cst_7 : f32 to vector<16x1xf32>
    %17 = arith.addf %13, %16 : vector<16x1xf32>
    %18 = math.rsqrt %17 : vector<16x1xf32>
    %19 = vector.broadcast %18 : vector<16x1xf32> to vector<16x32xf32>
    %20 = arith.mulf %15, %19 : vector<16x32xf32>
    %21 = vector.broadcast %1 : vector<1x32xf32> to vector<16x32xf32>
    %22 = arith.mulf %20, %21 : vector<16x32xf32>
    %23 = vector.broadcast %2 : vector<1x32xf32> to vector<16x32xf32>
    %24 = arith.addf %22, %23 : vector<16x32xf32>
    %c0_8 = arith.constant 0 : index
    %c0_9 = arith.constant 0 : index
    %25 = vector.load %arg2[%c0_8, %c0_9] : memref<16x16xf32, #tpu.memory_space<vmem>>, vector<16x16xf32>
    %26 = arith.truncf %24 : vector<16x32xf32> to vector<16x32xbf16>
    %c0_10 = arith.constant 0 : index
    %c0_11 = arith.constant 0 : index
    %c0_12 = arith.constant 0 : index
    %27 = vector.load %arg4[%c0_10, %c0_11, %c0_12] : memref<16x32x16xbf16, #tpu.memory_space<vmem>>, vector<1x32x16xbf16>
    %28 = vector.shape_cast %27 : vector<1x32x16xbf16> to vector<32x16xbf16>
    %cst_13 = arith.constant dense<0.000000e+00> : vector<16x16xf32>
    %29 = tpu.matmul %26, %28, %cst_13 {dimension_numbers = #tpu.dot_dimension_numbers<[1], [0], [0], [1], [0, 0, 1, 1], [], []>} : vector<16x32xbf16>, vector<32x16xbf16>, vector<16x16xf32> -> vector<16x16xf32>
    %c2 = arith.constant 2 : index
    %c0_14 = arith.constant 0 : index
    %30 = vector.load %arg6[%c2, %c0_14] : memref<30x64xf32, #tpu.memory_space<vmem>>, vector<1x16xf32>
    %31 = vector.broadcast %30 : vector<1x16xf32> to vector<16x16xf32>
    %32 = arith.addf %29, %31 : vector<16x16xf32>
    %c1_15 = arith.constant 1 : index
    %c0_16 = arith.constant 0 : index
    %c0_17 = arith.constant 0 : index
    %33 = vector.load %arg4[%c1_15, %c0_16, %c0_17] : memref<16x32x16xbf16, #tpu.memory_space<vmem>>, vector<1x32x16xbf16>
    %34 = vector.shape_cast %33 : vector<1x32x16xbf16> to vector<32x16xbf16>
    %cst_18 = arith.constant dense<0.000000e+00> : vector<16x16xf32>
    %35 = tpu.matmul %26, %34, %cst_18 {dimension_numbers = #tpu.dot_dimension_numbers<[1], [0], [0], [1], [0, 0, 1, 1], [], []>} : vector<16x32xbf16>, vector<32x16xbf16>, vector<16x16xf32> -> vector<16x16xf32>
    %c3 = arith.constant 3 : index
    %c0_19 = arith.constant 0 : index
    %36 = vector.load %arg6[%c3, %c0_19] : memref<30x64xf32, #tpu.memory_space<vmem>>, vector<1x16xf32>
    %37 = vector.broadcast %36 : vector<1x16xf32> to vector<16x16xf32>
    %38 = arith.addf %35, %37 : vector<16x16xf32>
    %c2_20 = arith.constant 2 : index
    %c0_21 = arith.constant 0 : index
    %c0_22 = arith.constant 0 : index
    %39 = vector.load %arg4[%c2_20, %c0_21, %c0_22] : memref<16x32x16xbf16, #tpu.memory_space<vmem>>, vector<1x32x16xbf16>
    %40 = vector.shape_cast %39 : vector<1x32x16xbf16> to vector<32x16xbf16>
    %cst_23 = arith.constant dense<0.000000e+00> : vector<16x16xf32>
    %41 = tpu.matmul %26, %40, %cst_23 {dimension_numbers = #tpu.dot_dimension_numbers<[1], [0], [0], [1], [0, 0, 1, 1], [], []>} : vector<16x32xbf16>, vector<32x16xbf16>, vector<16x16xf32> -> vector<16x16xf32>
    %c4 = arith.constant 4 : index
    %c0_24 = arith.constant 0 : index
    %42 = vector.load %arg6[%c4, %c0_24] : memref<30x64xf32, #tpu.memory_space<vmem>>, vector<1x16xf32>
    %43 = vector.broadcast %42 : vector<1x16xf32> to vector<16x16xf32>
    %44 = arith.addf %41, %43 : vector<16x16xf32>
    %45 = arith.truncf %32 : vector<16x16xf32> to vector<16x16xbf16>
    %46 = arith.truncf %38 : vector<16x16xf32> to vector<16x16xbf16>
    %cst_25 = arith.constant dense<0.000000e+00> : vector<16x16xf32>
    %47 = tpu.matmul %45, %46, %cst_25 {dimension_numbers = #tpu.dot_dimension_numbers<[1], [1], [0], [0], [0, 0, 1, 0], [], []>} : vector<16x16xbf16>, vector<16x16xbf16>, vector<16x16xf32> -> vector<16x16xf32>
    %48 = arith.addf %47, %25 : vector<16x16xf32>
    %cst_26 = arith.constant dense<0xFF800000> : vector<16xf32>
    %49 = vector.multi_reduction <maximumf>, %48, %cst_26 [1] : vector<16x16xf32> to vector<16xf32>
    %50 = vector.shape_cast %49 : vector<16xf32> to vector<16x1xf32>
    %51 = vector.broadcast %50 : vector<16x1xf32> to vector<16x16xf32>
    %52 = arith.subf %48, %51 : vector<16x16xf32>
    %53 = math.exp %52 : vector<16x16xf32>
    %cst_27 = arith.constant dense<0.000000e+00> : vector<16xf32>
    %54 = vector.multi_reduction <add>, %53, %cst_27 [1] : vector<16x16xf32> to vector<16xf32>
    %55 = vector.shape_cast %54 : vector<16xf32> to vector<16x1xf32>
    %56 = tpu.reciprocal %55 {approx = true} : vector<16x1xf32> -> vector<16x1xf32>
    %57 = vector.broadcast %56 : vector<16x1xf32> to vector<16x16xf32>
    %58 = arith.mulf %53, %57 : vector<16x16xf32>
    %59 = arith.truncf %58 : vector<16x16xf32> to vector<16x16xbf16>
    %60 = arith.truncf %44 : vector<16x16xf32> to vector<16x16xbf16>
    %cst_28 = arith.constant dense<0.000000e+00> : vector<16x16xf32>
    %61 = tpu.matmul %59, %60, %cst_28 {dimension_numbers = #tpu.dot_dimension_numbers<[1], [0], [0], [1], [0, 0, 1, 1], [], []>} : vector<16x16xbf16>, vector<16x16xbf16>, vector<16x16xf32> -> vector<16x16xf32>
    %62 = arith.truncf %61 : vector<16x16xf32> to vector<16x16xbf16>
    %c3_29 = arith.constant 3 : index
    %c0_30 = arith.constant 0 : index
    %c0_31 = arith.constant 0 : index
    %63 = vector.load %arg4[%c3_29, %c0_30, %c0_31] : memref<16x32x16xbf16, #tpu.memory_space<vmem>>, vector<1x32x16xbf16>
    %64 = vector.shape_cast %63 : vector<1x32x16xbf16> to vector<32x16xbf16>
    %cst_32 = arith.constant dense<0.000000e+00> : vector<16x32xf32>
    %65 = tpu.matmul %62, %64, %cst_32 {dimension_numbers = #tpu.dot_dimension_numbers<[1], [1], [0], [0], [0, 0, 1, 0], [], []>} : vector<16x16xbf16>, vector<32x16xbf16>, vector<16x32xf32> -> vector<16x32xf32>
    %c4_33 = arith.constant 4 : index
    %c0_34 = arith.constant 0 : index
    %c0_35 = arith.constant 0 : index
    %66 = vector.load %arg4[%c4_33, %c0_34, %c0_35] : memref<16x32x16xbf16, #tpu.memory_space<vmem>>, vector<1x32x16xbf16>
    %67 = vector.shape_cast %66 : vector<1x32x16xbf16> to vector<32x16xbf16>
    %cst_36 = arith.constant dense<0.000000e+00> : vector<16x16xf32>
    %68 = tpu.matmul %26, %67, %cst_36 {dimension_numbers = #tpu.dot_dimension_numbers<[1], [0], [0], [1], [0, 0, 1, 1], [], []>} : vector<16x32xbf16>, vector<32x16xbf16>, vector<16x16xf32> -> vector<16x16xf32>
    %c5 = arith.constant 5 : index
    %c0_37 = arith.constant 0 : index
    %69 = vector.load %arg6[%c5, %c0_37] : memref<30x64xf32, #tpu.memory_space<vmem>>, vector<1x16xf32>
    %70 = vector.broadcast %69 : vector<1x16xf32> to vector<16x16xf32>
    %71 = arith.addf %68, %70 : vector<16x16xf32>
    %c5_38 = arith.constant 5 : index
    %c0_39 = arith.constant 0 : index
    %c0_40 = arith.constant 0 : index
    %72 = vector.load %arg4[%c5_38, %c0_39, %c0_40] : memref<16x32x16xbf16, #tpu.memory_space<vmem>>, vector<1x32x16xbf16>
    %73 = vector.shape_cast %72 : vector<1x32x16xbf16> to vector<32x16xbf16>
    %cst_41 = arith.constant dense<0.000000e+00> : vector<16x16xf32>
    %74 = tpu.matmul %26, %73, %cst_41 {dimension_numbers = #tpu.dot_dimension_numbers<[1], [0], [0], [1], [0, 0, 1, 1], [], []>} : vector<16x32xbf16>, vector<32x16xbf16>, vector<16x16xf32> -> vector<16x16xf32>
    %c6 = arith.constant 6 : index
    %c0_42 = arith.constant 0 : index
    %75 = vector.load %arg6[%c6, %c0_42] : memref<30x64xf32, #tpu.memory_space<vmem>>, vector<1x16xf32>
    %76 = vector.broadcast %75 : vector<1x16xf32> to vector<16x16xf32>
    %77 = arith.addf %74, %76 : vector<16x16xf32>
    %c6_43 = arith.constant 6 : index
    %c0_44 = arith.constant 0 : index
    %c0_45 = arith.constant 0 : index
    %78 = vector.load %arg4[%c6_43, %c0_44, %c0_45] : memref<16x32x16xbf16, #tpu.memory_space<vmem>>, vector<1x32x16xbf16>
    %79 = vector.shape_cast %78 : vector<1x32x16xbf16> to vector<32x16xbf16>
    %cst_46 = arith.constant dense<0.000000e+00> : vector<16x16xf32>
    %80 = tpu.matmul %26, %79, %cst_46 {dimension_numbers = #tpu.dot_dimension_numbers<[1], [0], [0], [1], [0, 0, 1, 1], [], []>} : vector<16x32xbf16>, vector<32x16xbf16>, vector<16x16xf32> -> vector<16x16xf32>
    %c7 = arith.constant 7 : index
    %c0_47 = arith.constant 0 : index
    %81 = vector.load %arg6[%c7, %c0_47] : memref<30x64xf32, #tpu.memory_space<vmem>>, vector<1x16xf32>
    %82 = vector.broadcast %81 : vector<1x16xf32> to vector<16x16xf32>
    %83 = arith.addf %80, %82 : vector<16x16xf32>
    %84 = arith.truncf %71 : vector<16x16xf32> to vector<16x16xbf16>
    %85 = arith.truncf %77 : vector<16x16xf32> to vector<16x16xbf16>
    %cst_48 = arith.constant dense<0.000000e+00> : vector<16x16xf32>
    %86 = tpu.matmul %84, %85, %cst_48 {dimension_numbers = #tpu.dot_dimension_numbers<[1], [1], [0], [0], [0, 0, 1, 0], [], []>} : vector<16x16xbf16>, vector<16x16xbf16>, vector<16x16xf32> -> vector<16x16xf32>
    %87 = arith.addf %86, %25 : vector<16x16xf32>
    %cst_49 = arith.constant dense<0xFF800000> : vector<16xf32>
    %88 = vector.multi_reduction <maximumf>, %87, %cst_49 [1] : vector<16x16xf32> to vector<16xf32>
    %89 = vector.shape_cast %88 : vector<16xf32> to vector<16x1xf32>
    %90 = vector.broadcast %89 : vector<16x1xf32> to vector<16x16xf32>
    %91 = arith.subf %87, %90 : vector<16x16xf32>
    %92 = math.exp %91 : vector<16x16xf32>
    %cst_50 = arith.constant dense<0.000000e+00> : vector<16xf32>
    %93 = vector.multi_reduction <add>, %92, %cst_50 [1] : vector<16x16xf32> to vector<16xf32>
    %94 = vector.shape_cast %93 : vector<16xf32> to vector<16x1xf32>
    %95 = tpu.reciprocal %94 {approx = true} : vector<16x1xf32> -> vector<16x1xf32>
    %96 = vector.broadcast %95 : vector<16x1xf32> to vector<16x16xf32>
    %97 = arith.mulf %92, %96 : vector<16x16xf32>
    %98 = arith.truncf %97 : vector<16x16xf32> to vector<16x16xbf16>
    %99 = arith.truncf %83 : vector<16x16xf32> to vector<16x16xbf16>
    %cst_51 = arith.constant dense<0.000000e+00> : vector<16x16xf32>
    %100 = tpu.matmul %98, %99, %cst_51 {dimension_numbers = #tpu.dot_dimension_numbers<[1], [0], [0], [1], [0, 0, 1, 1], [], []>} : vector<16x16xbf16>, vector<16x16xbf16>, vector<16x16xf32> -> vector<16x16xf32>
    %101 = arith.truncf %100 : vector<16x16xf32> to vector<16x16xbf16>
    %c7_52 = arith.constant 7 : index
    %c0_53 = arith.constant 0 : index
    %c0_54 = arith.constant 0 : index
    %102 = vector.load %arg4[%c7_52, %c0_53, %c0_54] : memref<16x32x16xbf16, #tpu.memory_space<vmem>>, vector<1x32x16xbf16>
    %103 = vector.shape_cast %102 : vector<1x32x16xbf16> to vector<32x16xbf16>
    %cst_55 = arith.constant dense<0.000000e+00> : vector<16x32xf32>
    %104 = tpu.matmul %101, %103, %cst_55 {dimension_numbers = #tpu.dot_dimension_numbers<[1], [1], [0], [0], [0, 0, 1, 0], [], []>} : vector<16x16xbf16>, vector<32x16xbf16>, vector<16x32xf32> -> vector<16x32xf32>
    %105 = arith.addf %65, %104 : vector<16x32xf32>
    %c8 = arith.constant 8 : index
    %c0_56 = arith.constant 0 : index
    %106 = vector.load %arg6[%c8, %c0_56] : memref<30x64xf32, #tpu.memory_space<vmem>>, vector<1x32xf32>
    %107 = vector.broadcast %106 : vector<1x32xf32> to vector<16x32xf32>
    %108 = arith.addf %105, %107 : vector<16x32xf32>
    %109 = arith.addf %108, %24 : vector<16x32xf32>
    %c9 = arith.constant 9 : index
    %c0_57 = arith.constant 0 : index
    %110 = vector.load %arg6[%c9, %c0_57] : memref<30x64xf32, #tpu.memory_space<vmem>>, vector<1x32xf32>
    %c10 = arith.constant 10 : index
    %c0_58 = arith.constant 0 : index
    %111 = vector.load %arg6[%c10, %c0_58] : memref<30x64xf32, #tpu.memory_space<vmem>>, vector<1x32xf32>
    %cst_59 = arith.constant dense<0.000000e+00> : vector<16xf32>
    %112 = vector.multi_reduction <add>, %109, %cst_59 [1] : vector<16x32xf32> to vector<16xf32>
    %113 = vector.shape_cast %112 : vector<16xf32> to vector<16x1xf32>
    %cst_60 = arith.constant 3.200000e+01 : f32
    %114 = vector.broadcast %cst_60 : f32 to vector<16x1xf32>
    %115 = arith.divf %113, %114 : vector<16x1xf32>
    %116 = vector.broadcast %115 : vector<16x1xf32> to vector<16x32xf32>
    %117 = arith.subf %109, %116 : vector<16x32xf32>
    %118 = arith.mulf %117, %117 : vector<16x32xf32>
    %cst_61 = arith.constant dense<0.000000e+00> : vector<16xf32>
    %119 = vector.multi_reduction <add>, %118, %cst_61 [1] : vector<16x32xf32> to vector<16xf32>
    %120 = vector.shape_cast %119 : vector<16xf32> to vector<16x1xf32>
    %cst_62 = arith.constant 3.200000e+01 : f32
    %121 = vector.broadcast %cst_62 : f32 to vector<16x1xf32>
    %122 = arith.divf %120, %121 : vector<16x1xf32>
    %123 = vector.broadcast %115 : vector<16x1xf32> to vector<16x32xf32>
    %124 = arith.subf %109, %123 : vector<16x32xf32>
    %cst_63 = arith.constant 9.99999996E-13 : f32
    %125 = vector.broadcast %cst_63 : f32 to vector<16x1xf32>
    %126 = arith.addf %122, %125 : vector<16x1xf32>
    %127 = math.rsqrt %126 : vector<16x1xf32>
    %128 = vector.broadcast %127 : vector<16x1xf32> to vector<16x32xf32>
    %129 = arith.mulf %124, %128 : vector<16x32xf32>
    %130 = vector.broadcast %110 : vector<1x32xf32> to vector<16x32xf32>
    %131 = arith.mulf %129, %130 : vector<16x32xf32>
    %132 = vector.broadcast %111 : vector<1x32xf32> to vector<16x32xf32>
    %133 = arith.addf %131, %132 : vector<16x32xf32>
    %134 = arith.truncf %133 : vector<16x32xf32> to vector<16x32xbf16>
    %c0_64 = arith.constant 0 : index
    %c0_65 = arith.constant 0 : index
    %c0_66 = arith.constant 0 : index
    %135 = vector.load %arg5[%c0_64, %c0_65, %c0_66] : memref<4x64x32xbf16, #tpu.memory_space<vmem>>, vector<1x64x32xbf16>
    %136 = vector.shape_cast %135 : vector<1x64x32xbf16> to vector<64x32xbf16>
    %cst_67 = arith.constant dense<0.000000e+00> : vector<16x64xf32>
    %137 = tpu.matmul %134, %136, %cst_67 {dimension_numbers = #tpu.dot_dimension_numbers<[1], [1], [0], [0], [0, 0, 1, 0], [], []>} : vector<16x32xbf16>, vector<64x32xbf16>, vector<16x64xf32> -> vector<16x64xf32>
    %c11 = arith.constant 11 : index
    %c0_68 = arith.constant 0 : index
    %138 = vector.load %arg6[%c11, %c0_68] : memref<30x64xf32, #tpu.memory_space<vmem>>, vector<1x64xf32>
    %139 = vector.broadcast %138 : vector<1x64xf32> to vector<16x64xf32>
    %140 = arith.addf %137, %139 : vector<16x64xf32>
    %cst_69 = arith.constant 5.000000e-01 : f32
    %141 = vector.broadcast %cst_69 : f32 to vector<16x64xf32>
    %142 = arith.mulf %141, %140 : vector<16x64xf32>
    %cst_70 = arith.constant 4.471500e-02 : f32
    %143 = vector.broadcast %cst_70 : f32 to vector<16x64xf32>
    %144 = arith.mulf %143, %140 : vector<16x64xf32>
    %145 = arith.mulf %144, %140 : vector<16x64xf32>
    %146 = arith.mulf %145, %140 : vector<16x64xf32>
    %147 = arith.addf %140, %146 : vector<16x64xf32>
    %cst_71 = arith.constant 0.797884583 : f32
    %148 = vector.broadcast %cst_71 : f32 to vector<16x64xf32>
    %149 = arith.mulf %148, %147 : vector<16x64xf32>
    %150 = math.tanh %149 : vector<16x64xf32>
    %cst_72 = arith.constant 1.000000e+00 : f32
    %151 = vector.broadcast %cst_72 : f32 to vector<16x64xf32>
    %152 = arith.addf %151, %150 : vector<16x64xf32>
    %153 = arith.mulf %142, %152 : vector<16x64xf32>
    %154 = arith.truncf %153 : vector<16x64xf32> to vector<16x64xbf16>
    %c1_73 = arith.constant 1 : index
    %c0_74 = arith.constant 0 : index
    %c0_75 = arith.constant 0 : index
    %155 = vector.load %arg5[%c1_73, %c0_74, %c0_75] : memref<4x64x32xbf16, #tpu.memory_space<vmem>>, vector<1x64x32xbf16>
    %156 = vector.shape_cast %155 : vector<1x64x32xbf16> to vector<64x32xbf16>
    %cst_76 = arith.constant dense<0.000000e+00> : vector<16x32xf32>
    %157 = tpu.matmul %154, %156, %cst_76 {dimension_numbers = #tpu.dot_dimension_numbers<[1], [0], [0], [1], [0, 0, 1, 1], [], []>} : vector<16x64xbf16>, vector<64x32xbf16>, vector<16x32xf32> -> vector<16x32xf32>
    %c12 = arith.constant 12 : index
    %c0_77 = arith.constant 0 : index
    %158 = vector.load %arg6[%c12, %c0_77] : memref<30x64xf32, #tpu.memory_space<vmem>>, vector<1x32xf32>
    %159 = vector.broadcast %158 : vector<1x32xf32> to vector<16x32xf32>
    %160 = arith.addf %157, %159 : vector<16x32xf32>
    %161 = arith.addf %160, %133 : vector<16x32xf32>
    %c13 = arith.constant 13 : index
    %c0_78 = arith.constant 0 : index
    %162 = vector.load %arg6[%c13, %c0_78] : memref<30x64xf32, #tpu.memory_space<vmem>>, vector<1x32xf32>
    %c14 = arith.constant 14 : index
    %c0_79 = arith.constant 0 : index
    %163 = vector.load %arg6[%c14, %c0_79] : memref<30x64xf32, #tpu.memory_space<vmem>>, vector<1x32xf32>
    %cst_80 = arith.constant dense<0.000000e+00> : vector<16xf32>
    %164 = vector.multi_reduction <add>, %161, %cst_80 [1] : vector<16x32xf32> to vector<16xf32>
    %165 = vector.shape_cast %164 : vector<16xf32> to vector<16x1xf32>
    %cst_81 = arith.constant 3.200000e+01 : f32
    %166 = vector.broadcast %cst_81 : f32 to vector<16x1xf32>
    %167 = arith.divf %165, %166 : vector<16x1xf32>
    %168 = vector.broadcast %167 : vector<16x1xf32> to vector<16x32xf32>
    %169 = arith.subf %161, %168 : vector<16x32xf32>
    %170 = arith.mulf %169, %169 : vector<16x32xf32>
    %cst_82 = arith.constant dense<0.000000e+00> : vector<16xf32>
    %171 = vector.multi_reduction <add>, %170, %cst_82 [1] : vector<16x32xf32> to vector<16xf32>
    %172 = vector.shape_cast %171 : vector<16xf32> to vector<16x1xf32>
    %cst_83 = arith.constant 3.200000e+01 : f32
    %173 = vector.broadcast %cst_83 : f32 to vector<16x1xf32>
    %174 = arith.divf %172, %173 : vector<16x1xf32>
    %175 = vector.broadcast %167 : vector<16x1xf32> to vector<16x32xf32>
    %176 = arith.subf %161, %175 : vector<16x32xf32>
    %cst_84 = arith.constant 9.99999996E-13 : f32
    %177 = vector.broadcast %cst_84 : f32 to vector<16x1xf32>
    %178 = arith.addf %174, %177 : vector<16x1xf32>
    %179 = math.rsqrt %178 : vector<16x1xf32>
    %180 = vector.broadcast %179 : vector<16x1xf32> to vector<16x32xf32>
    %181 = arith.mulf %176, %180 : vector<16x32xf32>
    %182 = vector.broadcast %162 : vector<1x32xf32> to vector<16x32xf32>
    %183 = arith.mulf %181, %182 : vector<16x32xf32>
    %184 = vector.broadcast %163 : vector<1x32xf32> to vector<16x32xf32>
    %185 = arith.addf %183, %184 : vector<16x32xf32>
    %186 = arith.truncf %185 : vector<16x32xf32> to vector<16x32xbf16>
    %c8_85 = arith.constant 8 : index
    %c0_86 = arith.constant 0 : index
    %c0_87 = arith.constant 0 : index
    %187 = vector.load %arg4[%c8_85, %c0_86, %c0_87] : memref<16x32x16xbf16, #tpu.memory_space<vmem>>, vector<1x32x16xbf16>
    %188 = vector.shape_cast %187 : vector<1x32x16xbf16> to vector<32x16xbf16>
    %cst_88 = arith.constant dense<0.000000e+00> : vector<16x16xf32>
    %189 = tpu.matmul %186, %188, %cst_88 {dimension_numbers = #tpu.dot_dimension_numbers<[1], [0], [0], [1], [0, 0, 1, 1], [], []>} : vector<16x32xbf16>, vector<32x16xbf16>, vector<16x16xf32> -> vector<16x16xf32>
    %c15 = arith.constant 15 : index
    %c0_89 = arith.constant 0 : index
    %190 = vector.load %arg6[%c15, %c0_89] : memref<30x64xf32, #tpu.memory_space<vmem>>, vector<1x16xf32>
    %191 = vector.broadcast %190 : vector<1x16xf32> to vector<16x16xf32>
    %192 = arith.addf %189, %191 : vector<16x16xf32>
    %c9_90 = arith.constant 9 : index
    %c0_91 = arith.constant 0 : index
    %c0_92 = arith.constant 0 : index
    %193 = vector.load %arg4[%c9_90, %c0_91, %c0_92] : memref<16x32x16xbf16, #tpu.memory_space<vmem>>, vector<1x32x16xbf16>
    %194 = vector.shape_cast %193 : vector<1x32x16xbf16> to vector<32x16xbf16>
    %cst_93 = arith.constant dense<0.000000e+00> : vector<16x16xf32>
    %195 = tpu.matmul %186, %194, %cst_93 {dimension_numbers = #tpu.dot_dimension_numbers<[1], [0], [0], [1], [0, 0, 1, 1], [], []>} : vector<16x32xbf16>, vector<32x16xbf16>, vector<16x16xf32> -> vector<16x16xf32>
    %c16 = arith.constant 16 : index
    %c0_94 = arith.constant 0 : index
    %196 = vector.load %arg6[%c16, %c0_94] : memref<30x64xf32, #tpu.memory_space<vmem>>, vector<1x16xf32>
    %197 = vector.broadcast %196 : vector<1x16xf32> to vector<16x16xf32>
    %198 = arith.addf %195, %197 : vector<16x16xf32>
    %c10_95 = arith.constant 10 : index
    %c0_96 = arith.constant 0 : index
    %c0_97 = arith.constant 0 : index
    %199 = vector.load %arg4[%c10_95, %c0_96, %c0_97] : memref<16x32x16xbf16, #tpu.memory_space<vmem>>, vector<1x32x16xbf16>
    %200 = vector.shape_cast %199 : vector<1x32x16xbf16> to vector<32x16xbf16>
    %cst_98 = arith.constant dense<0.000000e+00> : vector<16x16xf32>
    %201 = tpu.matmul %186, %200, %cst_98 {dimension_numbers = #tpu.dot_dimension_numbers<[1], [0], [0], [1], [0, 0, 1, 1], [], []>} : vector<16x32xbf16>, vector<32x16xbf16>, vector<16x16xf32> -> vector<16x16xf32>
    %c17 = arith.constant 17 : index
    %c0_99 = arith.constant 0 : index
    %202 = vector.load %arg6[%c17, %c0_99] : memref<30x64xf32, #tpu.memory_space<vmem>>, vector<1x16xf32>
    %203 = vector.broadcast %202 : vector<1x16xf32> to vector<16x16xf32>
    %204 = arith.addf %201, %203 : vector<16x16xf32>
    %205 = arith.truncf %192 : vector<16x16xf32> to vector<16x16xbf16>
    %206 = arith.truncf %198 : vector<16x16xf32> to vector<16x16xbf16>
    %cst_100 = arith.constant dense<0.000000e+00> : vector<16x16xf32>
    %207 = tpu.matmul %205, %206, %cst_100 {dimension_numbers = #tpu.dot_dimension_numbers<[1], [1], [0], [0], [0, 0, 1, 0], [], []>} : vector<16x16xbf16>, vector<16x16xbf16>, vector<16x16xf32> -> vector<16x16xf32>
    %208 = arith.addf %207, %25 : vector<16x16xf32>
    %cst_101 = arith.constant dense<0xFF800000> : vector<16xf32>
    %209 = vector.multi_reduction <maximumf>, %208, %cst_101 [1] : vector<16x16xf32> to vector<16xf32>
    %210 = vector.shape_cast %209 : vector<16xf32> to vector<16x1xf32>
    %211 = vector.broadcast %210 : vector<16x1xf32> to vector<16x16xf32>
    %212 = arith.subf %208, %211 : vector<16x16xf32>
    %213 = math.exp %212 : vector<16x16xf32>
    %cst_102 = arith.constant dense<0.000000e+00> : vector<16xf32>
    %214 = vector.multi_reduction <add>, %213, %cst_102 [1] : vector<16x16xf32> to vector<16xf32>
    %215 = vector.shape_cast %214 : vector<16xf32> to vector<16x1xf32>
    %216 = tpu.reciprocal %215 {approx = true} : vector<16x1xf32> -> vector<16x1xf32>
    %217 = vector.broadcast %216 : vector<16x1xf32> to vector<16x16xf32>
    %218 = arith.mulf %213, %217 : vector<16x16xf32>
    %219 = arith.truncf %218 : vector<16x16xf32> to vector<16x16xbf16>
    %220 = arith.truncf %204 : vector<16x16xf32> to vector<16x16xbf16>
    %cst_103 = arith.constant dense<0.000000e+00> : vector<16x16xf32>
    %221 = tpu.matmul %219, %220, %cst_103 {dimension_numbers = #tpu.dot_dimension_numbers<[1], [0], [0], [1], [0, 0, 1, 1], [], []>} : vector<16x16xbf16>, vector<16x16xbf16>, vector<16x16xf32> -> vector<16x16xf32>
    %222 = arith.truncf %221 : vector<16x16xf32> to vector<16x16xbf16>
    %c11_104 = arith.constant 11 : index
    %c0_105 = arith.constant 0 : index
    %c0_106 = arith.constant 0 : index
    %223 = vector.load %arg4[%c11_104, %c0_105, %c0_106] : memref<16x32x16xbf16, #tpu.memory_space<vmem>>, vector<1x32x16xbf16>
    %224 = vector.shape_cast %223 : vector<1x32x16xbf16> to vector<32x16xbf16>
    %cst_107 = arith.constant dense<0.000000e+00> : vector<16x32xf32>
    %225 = tpu.matmul %222, %224, %cst_107 {dimension_numbers = #tpu.dot_dimension_numbers<[1], [1], [0], [0], [0, 0, 1, 0], [], []>} : vector<16x16xbf16>, vector<32x16xbf16>, vector<16x32xf32> -> vector<16x32xf32>
    %c12_108 = arith.constant 12 : index
    %c0_109 = arith.constant 0 : index
    %c0_110 = arith.constant 0 : index
    %226 = vector.load %arg4[%c12_108, %c0_109, %c0_110] : memref<16x32x16xbf16, #tpu.memory_space<vmem>>, vector<1x32x16xbf16>
    %227 = vector.shape_cast %226 : vector<1x32x16xbf16> to vector<32x16xbf16>
    %cst_111 = arith.constant dense<0.000000e+00> : vector<16x16xf32>
    %228 = tpu.matmul %186, %227, %cst_111 {dimension_numbers = #tpu.dot_dimension_numbers<[1], [0], [0], [1], [0, 0, 1, 1], [], []>} : vector<16x32xbf16>, vector<32x16xbf16>, vector<16x16xf32> -> vector<16x16xf32>
    %c18 = arith.constant 18 : index
    %c0_112 = arith.constant 0 : index
    %229 = vector.load %arg6[%c18, %c0_112] : memref<30x64xf32, #tpu.memory_space<vmem>>, vector<1x16xf32>
    %230 = vector.broadcast %229 : vector<1x16xf32> to vector<16x16xf32>
    %231 = arith.addf %228, %230 : vector<16x16xf32>
    %c13_113 = arith.constant 13 : index
    %c0_114 = arith.constant 0 : index
    %c0_115 = arith.constant 0 : index
    %232 = vector.load %arg4[%c13_113, %c0_114, %c0_115] : memref<16x32x16xbf16, #tpu.memory_space<vmem>>, vector<1x32x16xbf16>
    %233 = vector.shape_cast %232 : vector<1x32x16xbf16> to vector<32x16xbf16>
    %cst_116 = arith.constant dense<0.000000e+00> : vector<16x16xf32>
    %234 = tpu.matmul %186, %233, %cst_116 {dimension_numbers = #tpu.dot_dimension_numbers<[1], [0], [0], [1], [0, 0, 1, 1], [], []>} : vector<16x32xbf16>, vector<32x16xbf16>, vector<16x16xf32> -> vector<16x16xf32>
    %c19 = arith.constant 19 : index
    %c0_117 = arith.constant 0 : index
    %235 = vector.load %arg6[%c19, %c0_117] : memref<30x64xf32, #tpu.memory_space<vmem>>, vector<1x16xf32>
    %236 = vector.broadcast %235 : vector<1x16xf32> to vector<16x16xf32>
    %237 = arith.addf %234, %236 : vector<16x16xf32>
    %c14_118 = arith.constant 14 : index
    %c0_119 = arith.constant 0 : index
    %c0_120 = arith.constant 0 : index
    %238 = vector.load %arg4[%c14_118, %c0_119, %c0_120] : memref<16x32x16xbf16, #tpu.memory_space<vmem>>, vector<1x32x16xbf16>
    %239 = vector.shape_cast %238 : vector<1x32x16xbf16> to vector<32x16xbf16>
    %cst_121 = arith.constant dense<0.000000e+00> : vector<16x16xf32>
    %240 = tpu.matmul %186, %239, %cst_121 {dimension_numbers = #tpu.dot_dimension_numbers<[1], [0], [0], [1], [0, 0, 1, 1], [], []>} : vector<16x32xbf16>, vector<32x16xbf16>, vector<16x16xf32> -> vector<16x16xf32>
    %c20 = arith.constant 20 : index
    %c0_122 = arith.constant 0 : index
    %241 = vector.load %arg6[%c20, %c0_122] : memref<30x64xf32, #tpu.memory_space<vmem>>, vector<1x16xf32>
    %242 = vector.broadcast %241 : vector<1x16xf32> to vector<16x16xf32>
    %243 = arith.addf %240, %242 : vector<16x16xf32>
    %244 = arith.truncf %231 : vector<16x16xf32> to vector<16x16xbf16>
    %245 = arith.truncf %237 : vector<16x16xf32> to vector<16x16xbf16>
    %cst_123 = arith.constant dense<0.000000e+00> : vector<16x16xf32>
    %246 = tpu.matmul %244, %245, %cst_123 {dimension_numbers = #tpu.dot_dimension_numbers<[1], [1], [0], [0], [0, 0, 1, 0], [], []>} : vector<16x16xbf16>, vector<16x16xbf16>, vector<16x16xf32> -> vector<16x16xf32>
    %247 = arith.addf %246, %25 : vector<16x16xf32>
    %cst_124 = arith.constant dense<0xFF800000> : vector<16xf32>
    %248 = vector.multi_reduction <maximumf>, %247, %cst_124 [1] : vector<16x16xf32> to vector<16xf32>
    %249 = vector.shape_cast %248 : vector<16xf32> to vector<16x1xf32>
    %250 = vector.broadcast %249 : vector<16x1xf32> to vector<16x16xf32>
    %251 = arith.subf %247, %250 : vector<16x16xf32>
    %252 = math.exp %251 : vector<16x16xf32>
    %cst_125 = arith.constant dense<0.000000e+00> : vector<16xf32>
    %253 = vector.multi_reduction <add>, %252, %cst_125 [1] : vector<16x16xf32> to vector<16xf32>
    %254 = vector.shape_cast %253 : vector<16xf32> to vector<16x1xf32>
    %255 = tpu.reciprocal %254 {approx = true} : vector<16x1xf32> -> vector<16x1xf32>
    %256 = vector.broadcast %255 : vector<16x1xf32> to vector<16x16xf32>
    %257 = arith.mulf %252, %256 : vector<16x16xf32>
    %258 = arith.truncf %257 : vector<16x16xf32> to vector<16x16xbf16>
    %259 = arith.truncf %243 : vector<16x16xf32> to vector<16x16xbf16>
    %cst_126 = arith.constant dense<0.000000e+00> : vector<16x16xf32>
    %260 = tpu.matmul %258, %259, %cst_126 {dimension_numbers = #tpu.dot_dimension_numbers<[1], [0], [0], [1], [0, 0, 1, 1], [], []>} : vector<16x16xbf16>, vector<16x16xbf16>, vector<16x16xf32> -> vector<16x16xf32>
    %261 = arith.truncf %260 : vector<16x16xf32> to vector<16x16xbf16>
    %c15_127 = arith.constant 15 : index
    %c0_128 = arith.constant 0 : index
    %c0_129 = arith.constant 0 : index
    %262 = vector.load %arg4[%c15_127, %c0_128, %c0_129] : memref<16x32x16xbf16, #tpu.memory_space<vmem>>, vector<1x32x16xbf16>
    %263 = vector.shape_cast %262 : vector<1x32x16xbf16> to vector<32x16xbf16>
    %cst_130 = arith.constant dense<0.000000e+00> : vector<16x32xf32>
    %264 = tpu.matmul %261, %263, %cst_130 {dimension_numbers = #tpu.dot_dimension_numbers<[1], [1], [0], [0], [0, 0, 1, 0], [], []>} : vector<16x16xbf16>, vector<32x16xbf16>, vector<16x32xf32> -> vector<16x32xf32>
    %265 = arith.addf %225, %264 : vector<16x32xf32>
    %c21 = arith.constant 21 : index
    %c0_131 = arith.constant 0 : index
    %266 = vector.load %arg6[%c21, %c0_131] : memref<30x64xf32, #tpu.memory_space<vmem>>, vector<1x32xf32>
    %267 = vector.broadcast %266 : vector<1x32xf32> to vector<16x32xf32>
    %268 = arith.addf %265, %267 : vector<16x32xf32>
    %269 = arith.addf %268, %185 : vector<16x32xf32>
    %c22 = arith.constant 22 : index
    %c0_132 = arith.constant 0 : index
    %270 = vector.load %arg6[%c22, %c0_132] : memref<30x64xf32, #tpu.memory_space<vmem>>, vector<1x32xf32>
    %c23 = arith.constant 23 : index
    %c0_133 = arith.constant 0 : index
    %271 = vector.load %arg6[%c23, %c0_133] : memref<30x64xf32, #tpu.memory_space<vmem>>, vector<1x32xf32>
    %cst_134 = arith.constant dense<0.000000e+00> : vector<16xf32>
    %272 = vector.multi_reduction <add>, %269, %cst_134 [1] : vector<16x32xf32> to vector<16xf32>
    %273 = vector.shape_cast %272 : vector<16xf32> to vector<16x1xf32>
    %cst_135 = arith.constant 3.200000e+01 : f32
    %274 = vector.broadcast %cst_135 : f32 to vector<16x1xf32>
    %275 = arith.divf %273, %274 : vector<16x1xf32>
    %276 = vector.broadcast %275 : vector<16x1xf32> to vector<16x32xf32>
    %277 = arith.subf %269, %276 : vector<16x32xf32>
    %278 = arith.mulf %277, %277 : vector<16x32xf32>
    %cst_136 = arith.constant dense<0.000000e+00> : vector<16xf32>
    %279 = vector.multi_reduction <add>, %278, %cst_136 [1] : vector<16x32xf32> to vector<16xf32>
    %280 = vector.shape_cast %279 : vector<16xf32> to vector<16x1xf32>
    %cst_137 = arith.constant 3.200000e+01 : f32
    %281 = vector.broadcast %cst_137 : f32 to vector<16x1xf32>
    %282 = arith.divf %280, %281 : vector<16x1xf32>
    %283 = vector.broadcast %275 : vector<16x1xf32> to vector<16x32xf32>
    %284 = arith.subf %269, %283 : vector<16x32xf32>
    %cst_138 = arith.constant 9.99999996E-13 : f32
    %285 = vector.broadcast %cst_138 : f32 to vector<16x1xf32>
    %286 = arith.addf %282, %285 : vector<16x1xf32>
    %287 = math.rsqrt %286 : vector<16x1xf32>
    %288 = vector.broadcast %287 : vector<16x1xf32> to vector<16x32xf32>
    %289 = arith.mulf %284, %288 : vector<16x32xf32>
    %290 = vector.broadcast %270 : vector<1x32xf32> to vector<16x32xf32>
    %291 = arith.mulf %289, %290 : vector<16x32xf32>
    %292 = vector.broadcast %271 : vector<1x32xf32> to vector<16x32xf32>
    %293 = arith.addf %291, %292 : vector<16x32xf32>
    %294 = arith.truncf %293 : vector<16x32xf32> to vector<16x32xbf16>
    %c2_139 = arith.constant 2 : index
    %c0_140 = arith.constant 0 : index
    %c0_141 = arith.constant 0 : index
    %295 = vector.load %arg5[%c2_139, %c0_140, %c0_141] : memref<4x64x32xbf16, #tpu.memory_space<vmem>>, vector<1x64x32xbf16>
    %296 = vector.shape_cast %295 : vector<1x64x32xbf16> to vector<64x32xbf16>
    %cst_142 = arith.constant dense<0.000000e+00> : vector<16x64xf32>
    %297 = tpu.matmul %294, %296, %cst_142 {dimension_numbers = #tpu.dot_dimension_numbers<[1], [1], [0], [0], [0, 0, 1, 0], [], []>} : vector<16x32xbf16>, vector<64x32xbf16>, vector<16x64xf32> -> vector<16x64xf32>
    %c24 = arith.constant 24 : index
    %c0_143 = arith.constant 0 : index
    %298 = vector.load %arg6[%c24, %c0_143] : memref<30x64xf32, #tpu.memory_space<vmem>>, vector<1x64xf32>
    %299 = vector.broadcast %298 : vector<1x64xf32> to vector<16x64xf32>
    %300 = arith.addf %297, %299 : vector<16x64xf32>
    %cst_144 = arith.constant 5.000000e-01 : f32
    %301 = vector.broadcast %cst_144 : f32 to vector<16x64xf32>
    %302 = arith.mulf %301, %300 : vector<16x64xf32>
    %cst_145 = arith.constant 4.471500e-02 : f32
    %303 = vector.broadcast %cst_145 : f32 to vector<16x64xf32>
    %304 = arith.mulf %303, %300 : vector<16x64xf32>
    %305 = arith.mulf %304, %300 : vector<16x64xf32>
    %306 = arith.mulf %305, %300 : vector<16x64xf32>
    %307 = arith.addf %300, %306 : vector<16x64xf32>
    %cst_146 = arith.constant 0.797884583 : f32
    %308 = vector.broadcast %cst_146 : f32 to vector<16x64xf32>
    %309 = arith.mulf %308, %307 : vector<16x64xf32>
    %310 = math.tanh %309 : vector<16x64xf32>
    %cst_147 = arith.constant 1.000000e+00 : f32
    %311 = vector.broadcast %cst_147 : f32 to vector<16x64xf32>
    %312 = arith.addf %311, %310 : vector<16x64xf32>
    %313 = arith.mulf %302, %312 : vector<16x64xf32>
    %314 = arith.truncf %313 : vector<16x64xf32> to vector<16x64xbf16>
    %c3_148 = arith.constant 3 : index
    %c0_149 = arith.constant 0 : index
    %c0_150 = arith.constant 0 : index
    %315 = vector.load %arg5[%c3_148, %c0_149, %c0_150] : memref<4x64x32xbf16, #tpu.memory_space<vmem>>, vector<1x64x32xbf16>
    %316 = vector.shape_cast %315 : vector<1x64x32xbf16> to vector<64x32xbf16>
    %cst_151 = arith.constant dense<0.000000e+00> : vector<16x32xf32>
    %317 = tpu.matmul %314, %316, %cst_151 {dimension_numbers = #tpu.dot_dimension_numbers<[1], [0], [0], [1], [0, 0, 1, 1], [], []>} : vector<16x64xbf16>, vector<64x32xbf16>, vector<16x32xf32> -> vector<16x32xf32>
    %c25 = arith.constant 25 : index
    %c0_152 = arith.constant 0 : index
    %318 = vector.load %arg6[%c25, %c0_152] : memref<30x64xf32, #tpu.memory_space<vmem>>, vector<1x32xf32>
    %319 = vector.broadcast %318 : vector<1x32xf32> to vector<16x32xf32>
    %320 = arith.addf %317, %319 : vector<16x32xf32>
    %321 = arith.addf %320, %293 : vector<16x32xf32>
    %c26 = arith.constant 26 : index
    %c0_153 = arith.constant 0 : index
    %322 = vector.load %arg6[%c26, %c0_153] : memref<30x64xf32, #tpu.memory_space<vmem>>, vector<1x32xf32>
    %c27 = arith.constant 27 : index
    %c0_154 = arith.constant 0 : index
    %323 = vector.load %arg6[%c27, %c0_154] : memref<30x64xf32, #tpu.memory_space<vmem>>, vector<1x32xf32>
    %cst_155 = arith.constant dense<0.000000e+00> : vector<16xf32>
    %324 = vector.multi_reduction <add>, %321, %cst_155 [1] : vector<16x32xf32> to vector<16xf32>
    %325 = vector.shape_cast %324 : vector<16xf32> to vector<16x1xf32>
    %cst_156 = arith.constant 3.200000e+01 : f32
    %326 = vector.broadcast %cst_156 : f32 to vector<16x1xf32>
    %327 = arith.divf %325, %326 : vector<16x1xf32>
    %328 = vector.broadcast %327 : vector<16x1xf32> to vector<16x32xf32>
    %329 = arith.subf %321, %328 : vector<16x32xf32>
    %330 = arith.mulf %329, %329 : vector<16x32xf32>
    %cst_157 = arith.constant dense<0.000000e+00> : vector<16xf32>
    %331 = vector.multi_reduction <add>, %330, %cst_157 [1] : vector<16x32xf32> to vector<16xf32>
    %332 = vector.shape_cast %331 : vector<16xf32> to vector<16x1xf32>
    %cst_158 = arith.constant 3.200000e+01 : f32
    %333 = vector.broadcast %cst_158 : f32 to vector<16x1xf32>
    %334 = arith.divf %332, %333 : vector<16x1xf32>
    %335 = vector.broadcast %327 : vector<16x1xf32> to vector<16x32xf32>
    %336 = arith.subf %321, %335 : vector<16x32xf32>
    %cst_159 = arith.constant 9.99999996E-13 : f32
    %337 = vector.broadcast %cst_159 : f32 to vector<16x1xf32>
    %338 = arith.addf %334, %337 : vector<16x1xf32>
    %339 = math.rsqrt %338 : vector<16x1xf32>
    %340 = vector.broadcast %339 : vector<16x1xf32> to vector<16x32xf32>
    %341 = arith.mulf %336, %340 : vector<16x32xf32>
    %342 = vector.broadcast %322 : vector<1x32xf32> to vector<16x32xf32>
    %343 = arith.mulf %341, %342 : vector<16x32xf32>
    %344 = vector.broadcast %323 : vector<1x32xf32> to vector<16x32xf32>
    %345 = arith.addf %343, %344 : vector<16x32xf32>
    %c0_160 = arith.constant 0 : index
    %c0_161 = arith.constant 0 : index
    %346 = vector.load %arg3[%c0_160, %c0_161] : memref<2x16xf32, #tpu.memory_space<vmem>>, vector<2x16xf32>
    %cst_162 = arith.constant dense<0.000000e+00> : vector<2x32xf32>
    %347 = tpu.matmul %346, %345, %cst_162 {dimension_numbers = #tpu.dot_dimension_numbers<[1], [0], [0], [1], [0, 0, 1, 1], [], []>} : vector<2x16xf32>, vector<16x32xf32>, vector<2x32xf32> -> vector<2x32xf32>
    %c28 = arith.constant 28 : index
    %c0_163 = arith.constant 0 : index
    %348 = vector.load %arg6[%c28, %c0_163] : memref<30x64xf32, #tpu.memory_space<vmem>>, vector<1x32xf32>
    %349 = vector.broadcast %348 : vector<1x32xf32> to vector<2x32xf32>
    %350 = arith.mulf %347, %349 : vector<2x32xf32>
    %cst_164 = arith.constant dense<0.000000e+00> : vector<2xf32>
    %351 = vector.multi_reduction <add>, %350, %cst_164 [1] : vector<2x32xf32> to vector<2xf32>
    %352 = vector.shape_cast %351 : vector<2xf32> to vector<2x1xf32>
    %c29 = arith.constant 29 : index
    %c0_165 = arith.constant 0 : index
    %353 = vector.load %arg6[%c29, %c0_165] : memref<30x64xf32, #tpu.memory_space<vmem>>, vector<1x1xf32>
    %354 = vector.broadcast %353 : vector<1x1xf32> to vector<2x1xf32>
    %355 = arith.addf %352, %354 : vector<2x1xf32>
    %c0_166 = arith.constant 0 : index
    %c0_167 = arith.constant 0 : index
    %356 = vector.load %arg7[%c0_166, %c0_167] : memref<2x1xf32, #tpu.memory_space<vmem>>, vector<2x1xf32>
    tpu.vector_store %arg7[%c0_166, %c0_167], %355 {strides = array<i32>} : memref<2x1xf32, #tpu.memory_space<vmem>>, vector<2x1xf32>,
    return
  }
  func.func @transform_0(%arg0: i32) -> (i32, i32) {
    %c0_i32 = arith.constant 0 : i32
    %c0_i32_0 = arith.constant 0 : i32
    %c0_i32_1 = arith.constant 0 : i32
    return %c0_i32, %c0_i32_0 : i32, i32
  }
  func.func @transform_1(%arg0: i32) -> (i32, i32) {
    %c0_i32 = arith.constant 0 : i32
    %c0_i32_0 = arith.constant 0 : i32
    %c0_i32_1 = arith.constant 0 : i32
    return %c0_i32, %c0_i32_0 : i32, i32
  }
  func.func @transform_2(%arg0: i32) -> (i32, i32) {
    %c0_i32 = arith.constant 0 : i32
    %c0_i32_0 = arith.constant 0 : i32
    %c0_i32_1 = arith.constant 0 : i32
    return %c0_i32, %c0_i32_0 : i32, i32
  }
  func.func @transform_3(%arg0: i32) -> (i32, i32, i32) {
    %c0_i32 = arith.constant 0 : i32
    %c0_i32_0 = arith.constant 0 : i32
    %c0_i32_1 = arith.constant 0 : i32
    %c0_i32_2 = arith.constant 0 : i32
    return %c0_i32, %c0_i32_0, %c0_i32_1 : i32, i32, i32
  }
  func.func @transform_4(%arg0: i32) -> (i32, i32, i32) {
    %c0_i32 = arith.constant 0 : i32
    %c0_i32_0 = arith.constant 0 : i32
    %c0_i32_1 = arith.constant 0 : i32
    %c0_i32_2 = arith.constant 0 : i32
    return %c0_i32, %c0_i32_0, %c0_i32_1 : i32, i32, i32
  }
  func.func @transform_5(%arg0: i32) -> (i32, i32) {
    %c0_i32 = arith.constant 0 : i32
    %c0_i32_0 = arith.constant 0 : i32
    %c0_i32_1 = arith.constant 0 : i32
    return %c0_i32, %c0_i32_0 : i32, i32
  }
  func.func @transform_6(%arg0: i32) -> (i32, i32) {
    %c0_i32 = arith.constant 0 : i32
    %c0_i32_0 = arith.constant 0 : i32
    %c0_i32_1 = arith.constant 0 : i32
    return %c0_i32, %c0_i32_0 : i32, i32
  }
}

</mosaic_0001>

<llo_original>
// kernel: mul.29
$region0: #{mul.29}
  %s0 = inlined_call_operand.vmem [shape: f32[2,8], index: 0, kind: input, shape index: {}]
  %s1 = inlined_call_operand.vmem [shape: f32[16], index: 1, kind: output, shape index: {}]
  $region1: #{mul.29} parent=0
    #allocation0 [shape = 'u8[4096]{0}', space=vmem, size = 0x1000, scoped, tag = 'scoped mem for output reshape']
    #allocation1 [shape = 'u8[4096]{0}', space=vmem, size = 0x1000, scoped, tag = 'scoped mem for input reshape']
    %s3 = sshllo.u32 0, 2
    %v4 = vld [vmem:[%s0] sm:%s3]
    %5 = vst [vmem:[#allocation1] sm:%s3] %v4
    %v6 = vld [vmem:[#allocation1] sm:$0x1]
    %vm7 = vcmask 64512
    %8 = vst.msk [vmem:[#allocation0] sm:$0x1] %vm7, %v6
    %s9 = scalar_lea.vmem [#allocation1], 1
    %v10 = vld [vmem:[%s9] sm:$0x1]
    %11 = vrot.lane.b32.xlu0 %v10, 8
    %v12 = vpop.permute.xlu0 %11
    %vm13 = vcmask 130112
    %14 = vst.msk [vmem:[#allocation0] sm:$0x1] %vm13, %v12
    %s16 = sshllo.u32 0, 1
    %v18 = vld [vmem:[#allocation0] sm:%s16]
    %s19 = sshllo.u32 0, 1
    %20 = vst [vmem:[%s1] sm:%s19] %v18

// kernel: plm_regressor_forward.1
$region0: #{plm_regressor_forward.1}
  #allocation0 [shape = 'u32[]', space=smem, size = 0x4, offset = 0x4, fixed_abs, tag = 'smem constant byte address 0x4 - core index']
  #allocation1 [shape = 'u32[144,128]{1,0:T(1,128)}', space=vmem, size = 0x12000, scoped, tag = 'internal scratch']
  %s0 = inlined_call_operand.vmem [shape: f32[16,32], index: 0, kind: input, shape index: {}]
  %s1 = inlined_call_operand.vmem [shape: f32[16,16], index: 1, kind: input, shape index: {}]
  %s2 = inlined_call_operand.vmem [shape: f32[2,16], index: 2, kind: input, shape index: {}]
  %s3 = inlined_call_operand.vmem [shape: bf16[16,32,16], index: 3, kind: input, shape index: {}]
  %s4 = inlined_call_operand.vmem [shape: bf16[4,64,32], index: 4, kind: input, shape index: {}]
  %s5 = inlined_call_operand.vmem [shape: f32[30,64], index: 5, kind: input, shape index: {}]
  %s6 = inlined_call_operand.vmem [shape: f32[2,1], index: 6, kind: output, shape index: {}]
  %s7 = sld [smem:[#allocation0]]
  $region34: #{plm_regressor_forward.1} parent=0
    _
  %s9 = ssub.s32 1, %s7
  %s10 = scalar_select 0, %s9, %s7
  // Predicated region
  $region2: #{plm_regressor_forward.1} parent=0 // pred_check
    _
  $region3: #{plm_regressor_forward.1} parent=0 // pred_check_branch
    %12 = sbr.rel (0) target = $region5
  $region4: #{plm_regressor_forward.1} parent=0 // pred_region
    _
  $region5: #{plm_regressor_forward.1} parent=0 // pred_fallthru
    _
  // Predicated region
  $region6: #{plm_regressor_forward.1} parent=0 // pred_check
    _
  $region7: #{plm_regressor_forward.1} parent=0 // pred_check_branch
    %14 = sbr.rel (0) target = $region9
  $region8: #{plm_regressor_forward.1} parent=0 // pred_region
    _
  $region9: #{plm_regressor_forward.1} parent=0 // pred_fallthru
    _
  // Predicated region
  $region10: #{plm_regressor_forward.1} parent=0 // pred_check
    _
  $region11: #{plm_regressor_forward.1} parent=0 // pred_check_branch
    %16 = sbr.rel (0) target = $region13
  $region12: #{plm_regressor_forward.1} parent=0 // pred_region
    _
  $region13: #{plm_regressor_forward.1} parent=0 // pred_fallthru
    _
  // Predicated region
  $region14: #{plm_regressor_forward.1} parent=0 // pred_check
    _
  $region15: #{plm_regressor_forward.1} parent=0 // pred_check_branch
    %18 = sbr.rel (0) target = $region17
  $region16: #{plm_regressor_forward.1} parent=0 // pred_region
    _
  $region17: #{plm_regressor_forward.1} parent=0 // pred_fallthru
    _
  // Predicated region
  $region18: #{plm_regressor_forward.1} parent=0 // pred_check
    _
  $region19: #{plm_regressor_forward.1} parent=0 // pred_check_branch
    %20 = sbr.rel (0) target = $region21
  $region20: #{plm_regressor_forward.1} parent=0 // pred_region
    _
  $region21: #{plm_regressor_forward.1} parent=0 // pred_fallthru
    _
  // Predicated region
  $region22: #{plm_regressor_forward.1} parent=0 // pred_check
    _
  $region23: #{plm_regressor_forward.1} parent=0 // pred_check_branch
    %22 = sbr.rel (0) target = $region25
  $region24: #{plm_regressor_forward.1} parent=0 // pred_region
    _
  $region25: #{plm_regressor_forward.1} parent=0 // pred_fallthru
    _
  %v24 = vld [vmem:[%s0] sm:$0xff]
  %v25 = vld [vmem:[%s0 + $0x8] sm:$0xff]
  %v26 = vld [vmem:[%s5] sm:$0x1]
  %v27 = vld [vmem:[%s5 + $0x1] sm:$0x1]
  %vm28 = vcmask 261120
  %v29 = vsel %vm28, %v24, 0.0
  %30 = vadd.xlane.f32.xlu0 %v29
  %v31 = vpop.xlane.xlu0 %30
  %v32 = vsel %vm28, %v25, 0.0
  %33 = vadd.xlane.f32.xlu0 %v32
  %v34 = vpop.xlane.xlu0 %33
  %v35 = vrcp.pop 32.0
  %v36 = vmul.f32 %v31, %v35
  %v37 = vmul.f32 %v34, %v35
  %v38 = vsub.f32 %v24, %v36
  %v39 = vsub.f32 %v25, %v37
  %v40 = vmul.f32 %v38, %v38
  %v41 = vmul.f32 %v39, %v39
  %v42 = vsel %vm28, %v40, 0.0
  %43 = vadd.xlane.f32.xlu0 %v42
  %v44 = vpop.xlane.xlu0 %43
  %v45 = vsel %vm28, %v41, 0.0
  %46 = vadd.xlane.f32.xlu0 %v45
  %v47 = vpop.xlane.xlu0 %46
  %v48 = vmul.f32 %v44, %v35
  %v49 = vmul.f32 %v47, %v35
  %v50 = vadd.f32 %v48, 1e-12
  %v51 = vadd.f32 %v49, 1e-12
  %v52 = vrsqrt.pop %v50
  %v53 = vrsqrt.pop %v51
  %v54 = vmul.f32 %v38, %v52
  %v55 = vmul.f32 %v39, %v53
  %v56 = vlaneseq
  %v57 = vshrl.u32 %v56, 7
  %v58 = vsub.s32 0, %v57
  %v59 = vrot.slane %v26, %v58
  %v60 = vmul.f32 %v54, %v59
  %v61 = vmul.f32 %v55, %v59
  %v62 = vlaneseq
  %v63 = vshrl.u32 %v62, 7
  %v64 = vsub.s32 0, %v63
  %v65 = vrot.slane %v27, %v64
  %v66 = vadd.f32 %v60, %v65
  %v67 = vadd.f32 %v61, %v65
  %v68 = vld [vmem:[%s1] sm:$0xff]
  %v69 = vld [vmem:[%s1 + $0x8] sm:$0xff]
  %v70 = vpack.c.bf16 %v67, %v66
  %v71 = vld [vmem:[%s3] sm:$0xf]
  %v72 = vld [vmem:[%s3 + $0x4] sm:$0xf]
  %v73 = vld [vmem:[%s3 + $0x8] sm:$0xf]
  %v74 = vld [vmem:[%s3 + $0xc] sm:$0xf]
  %v75 = vld [vmem:[%s5 + $0x2] sm:$0x1]
  %v76 = vlaneseq
  %v77 = vshrl.u32 %v76, 7
  %v78 = vsub.s32 0, %v77
  %v79 = vrot.slane %v75, %v78
  %v84 = vunpack.c.l.b16 %v71
  %v85 = vunpack.c.l.b16 %v72
  %v86 = vunpack.c.l.b16 %v73
  %v87 = vunpack.c.l.b16 %v74
  %v88 = vpack.c.b16 %v85, %v84
  %v89 = vpack.c.b16 %v87, %v86
  %v93 = vsel %vm28, %v70, 0
  %95 = vmatprep.subr.bf16.mxu0 0
  %96 = vmatpush1.bf16.msra.mxu0 %v88
  %97 = vmatprep.subr.bf16.mxu0 0
  %98 = vmatpush1.bf16.msra.mxu0 %v89
  %99 = vmatprep.subr.bf16.mxu0 0
  %100 = vmatpush1.bf16.msra.mxu0 0
  %101 = vmatprep.subr.bf16.mxu0 0
  %102 = vmatpush1.bf16.msra.mxu0 0
  %103 = vmatprep.subr.bf16.mxu0 0
  %104 = vmatpush1.bf16.msra.mxu0 0
  %105 = vmatprep.subr.bf16.mxu0 0
  %106 = vmatpush1.bf16.msra.mxu0 0
  %107 = vmatprep.subr.bf16.mxu0 0
  %108 = vmatpush1.bf16.msra.mxu0 0
  %109 = vmatprep.subr.bf16.mxu0 0
  %110 = vmatpush1.bf16.msra.mxu0 0
  %111 = vmatprep.subr.bf16.mxu0 0
  %112 = vmatpush1.bf16.msra.mxu0 0
  %113 = vmatprep.subr.bf16.mxu0 0
  %114 = vmatpush1.bf16.msra.mxu0 0
  %115 = vmatprep.subr.bf16.mxu0 0
  %116 = vmatpush1.bf16.msra.mxu0 0
  %117 = vmatprep.subr.bf16.mxu0 0
  %118 = vmatpush1.bf16.msra.mxu0 0
  %119 = vmatprep.subr.bf16.mxu0 0
  %120 = vmatpush1.bf16.msra.mxu0 0
  %121 = vmatprep.subr.bf16.mxu0 0
  %122 = vmatpush1.bf16.msra.mxu0 0
  %123 = vmatprep.subr.bf16.mxu0 0
  %124 = vmatpush1.bf16.msra.mxu0 0
  %125 = vmatprep.subr.bf16.mxu0 0
  %126 = vmatpush1.bf16.msra.mxu0 0
  %127 = vmatprep.mubr.bf16.mxu0 0
  %128 = vmatmul.mubr.bf16.gmra.mrb[0].mxu0 %v93
  %v129 = vpop.f32.mrb[0].mxu0
  %v130 = vadd.f32 %v79, %v129
  %v131 = vpop.f32.mrb[0].mxu0
  %v132 = vpop.f32.mrb[0].mxu0
  %v133 = vadd.f32 %v79, %v132
  %v134 = vpop.f32.mrb[0].mxu0
  %135 = vdwg.mxu0
  %s136 = scalar_lea.vmem %s3, 16
  %v137 = vld [vmem:[%s136] sm:$0xf]
  %v138 = vld [vmem:[%s136 + $0x4] sm:$0xf]
  %v139 = vld [vmem:[%s136 + $0x8] sm:$0xf]
  %v140 = vld [vmem:[%s136 + $0xc] sm:$0xf]
  %v141 = vld [vmem:[%s5 + $0x3] sm:$0x1]
  %v142 = vlaneseq
  %v143 = vshrl.u32 %v142, 7
  %v144 = vsub.s32 0, %v143
  %v145 = vrot.slane %v141, %v144
  %v150 = vunpack.c.l.b16 %v137
  %v151 = vunpack.c.l.b16 %v138
  %v152 = vunpack.c.l.b16 %v139
  %v153 = vunpack.c.l.b16 %v140
  %v154 = vpack.c.b16 %v151, %v150
  %v155 = vpack.c.b16 %v153, %v152
  %158 = vmatprep.subr.bf16.mxu0 0
  %159 = vmatpush1.bf16.msra.mxu0 %v154
  %160 = vmatprep.subr.bf16.mxu0 0
  %161 = vmatpush1.bf16.msra.mxu0 %v155
  %162 = vmatprep.subr.bf16.mxu0 0
  %163 = vmatpush1.bf16.msra.mxu0 0
  %164 = vmatprep.subr.bf16.mxu0 0
  %165 = vmatpush1.bf16.msra.mxu0 0
  %166 = vmatprep.subr.bf16.mxu0 0
  %167 = vmatpush1.bf16.msra.mxu0 0
  %168 = vmatprep.subr.bf16.mxu0 0
  %169 = vmatpush1.bf16.msra.mxu0 0
  %170 = vmatprep.subr.bf16.mxu0 0
  %171 = vmatpush1.bf16.msra.mxu0 0
  %172 = vmatprep.subr.bf16.mxu0 0
  %173 = vmatpush1.bf16.msra.mxu0 0
  %174 = vmatprep.subr.bf16.mxu0 0
  %175 = vmatpush1.bf16.msra.mxu0 0
  %176 = vmatprep.subr.bf16.mxu0 0
  %177 = vmatpush1.bf16.msra.mxu0 0
  %178 = vmatprep.subr.bf16.mxu0 0
  %179 = vmatpush1.bf16.msra.mxu0 0
  %180 = vmatprep.subr.bf16.mxu0 0
  %181 = vmatpush1.bf16.msra.mxu0 0
  %182 = vmatprep.subr.bf16.mxu0 0
  %183 = vmatpush1.bf16.msra.mxu0 0
  %184 = vmatprep.subr.bf16.mxu0 0
  %185 = vmatpush1.bf16.msra.mxu0 0
  %186 = vmatprep.subr.bf16.mxu0 0
  %187 = vmatpush1.bf16.msra.mxu0 0
  %188 = vmatprep.subr.bf16.mxu0 0
  %189 = vmatpush1.bf16.msra.mxu0 0
  %190 = vmatprep.mubr.bf16.mxu0 0
  %191 = vmatmul.mubr.bf16.gmra.mrb[0].mxu0 %v93
  %v192 = vpop.f32.mrb[0].mxu0
  %v193 = vadd.f32 %v145, %v192
  %v194 = vpop.f32.mrb[0].mxu0
  %v195 = vpop.f32.mrb[0].mxu0
  %v196 = vadd.f32 %v145, %v195
  %v197 = vpop.f32.mrb[0].mxu0
  %198 = vdwg.mxu0
  %s199 = scalar_lea.vmem %s3, 32
  %v200 = vld [vmem:[%s199] sm:$0xf]
  %v201 = vld [vmem:[%s199 + $0x4] sm:$0xf]
  %v202 = vld [vmem:[%s199 + $0x8] sm:$0xf]
  %v203 = vld [vmem:[%s199 + $0xc] sm:$0xf]
  %v204 = vld [vmem:[%s5 + $0x4] sm:$0x1]
  %v205 = vlaneseq
  %v206 = vshrl.u32 %v205, 7
  %v207 = vsub.s32 0, %v206
  %v208 = vrot.slane %v204, %v207
  %v213 = vunpack.c.l.b16 %v200
  %v214 = vunpack.c.l.b16 %v201
  %v215 = vunpack.c.l.b16 %v202
  %v216 = vunpack.c.l.b16 %v203
  %v217 = vpack.c.b16 %v214, %v213
  %v218 = vpack.c.b16 %v216, %v215
  %221 = vmatprep.subr.bf16.mxu0 0
  %222 = vmatpush1.bf16.msra.mxu0 %v217
  %223 = vmatprep.subr.bf16.mxu0 0
  %224 = vmatpush1.bf16.msra.mxu0 %v218
  %225 = vmatprep.subr.bf16.mxu0 0
  %226 = vmatpush1.bf16.msra.mxu0 0
  %227 = vmatprep.subr.bf16.mxu0 0
  %228 = vmatpush1.bf16.msra.mxu0 0
  %229 = vmatprep.subr.bf16.mxu0 0
  %230 = vmatpush1.bf16.msra.mxu0 0
  %231 = vmatprep.subr.bf16.mxu0 0
  %232 = vmatpush1.bf16.msra.mxu0 0
  %233 = vmatprep.subr.bf16.mxu0 0
  %234 = vmatpush1.bf16.msra.mxu0 0
  %235 = vmatprep.subr.bf16.mxu0 0
  %236 = vmatpush1.bf16.msra.mxu0 0
  %237 = vmatprep.subr.bf16.mxu0 0
  %238 = vmatpush1.bf16.msra.mxu0 0
  %239 = vmatprep.subr.bf16.mxu0 0
  %240 = vmatpush1.bf16.msra.mxu0 0
  %241 = vmatprep.subr.bf16.mxu0 0
  %242 = vmatpush1.bf16.msra.mxu0 0
  %243 = vmatprep.subr.bf16.mxu0 0
  %244 = vmatpush1.bf16.msra.mxu0 0
  %245 = vmatprep.subr.bf16.mxu0 0
  %246 = vmatpush1.bf16.msra.mxu0 0
  %247 = vmatprep.subr.bf16.mxu0 0
  %248 = vmatpush1.bf16.msra.mxu0 0
  %249 = vmatprep.subr.bf16.mxu0 0
  %250 = vmatpush1.bf16.msra.mxu0 0
  %251 = vmatprep.subr.bf16.mxu0 0
  %252 = vmatpush1.bf16.msra.mxu0 0
  %253 = vmatprep.mubr.bf16.mxu0 0
  %254 = vmatmul.mubr.bf16.gmra.mrb[0].mxu0 %v93
  %v255 = vpop.f32.mrb[0].mxu0
  %v256 = vadd.f32 %v208, %v255
  %v257 = vpop.f32.mrb[0].mxu0
  %v258 = vpop.f32.mrb[0].mxu0
  %v259 = vadd.f32 %v208, %v258
  %v260 = vpop.f32.mrb[0].mxu0
  %261 = vdwg.mxu0
  %v262 = vpack.c.bf16 %v133, %v130
  %v263 = vpack.c.bf16 %v196, %v193
  %vm264 = vcmask 130048
  %v266 = vsel %vm264, %v262, 0
  %v269 = vsel %vm264, %v263, 0
  %271 = vmatprep.subr.bf16.mxu0 0
  %272 = vmatpush1.bf16.xpose.msra.mxu0 %v269
  %273 = vmatprep.subr.bf16.mxu0 0
  %274 = vmatpush1.bf16.xpose.msra.mxu0 0
  %275 = vmatprep.subr.bf16.mxu0 0
  %276 = vmatpush1.bf16.xpose.msra.mxu0 0
  %277 = vmatprep.subr.bf16.mxu0 0
  %278 = vmatpush1.bf16.xpose.msra.mxu0 0
  %279 = vmatprep.subr.bf16.mxu0 0
  %280 = vmatpush1.bf16.xpose.msra.mxu0 0
  %281 = vmatprep.subr.bf16.mxu0 0
  %282 = vmatpush1.bf16.xpose.msra.mxu0 0
  %283 = vmatprep.subr.bf16.mxu0 0
  %284 = vmatpush1.bf16.xpose.msra.mxu0 0
  %285 = vmatprep.subr.bf16.mxu0 0
  %286 = vmatpush1.bf16.xpose.msra.mxu0 0
  %287 = vmatprep.subr.bf16.mxu0 0
  %288 = vmatpush1.bf16.xpose.msra.mxu0 0
  %289 = vmatprep.subr.bf16.mxu0 0
  %290 = vmatpush1.bf16.xpose.msra.mxu0 0
  %291 = vmatprep.subr.bf16.mxu0 0
  %292 = vmatpush1.bf16.xpose.msra.mxu0 0
  %293 = vmatprep.subr.bf16.mxu0 0
  %294 = vmatpush1.bf16.xpose.msra.mxu0 0
  %295 = vmatprep.subr.bf16.mxu0 0
  %296 = vmatpush1.bf16.xpose.msra.mxu0 0
  %297 = vmatprep.subr.bf16.mxu0 0
  %298 = vmatpush1.bf16.xpose.msra.mxu0 0
  %299 = vmatprep.subr.bf16.mxu0 0
  %300 = vmatpush1.bf16.xpose.msra.mxu0 0
  %301 = vmatprep.subr.bf16.mxu0 0
  %302 = vmatpush1.bf16.xpose.msra.mxu0 0
  %303 = vmatprep.mubr.bf16.mxu0 0
  %304 = vmatmul.mubr.bf16.gmra.mrb[0].mxu0 %v266
  %v305 = vpop.f32.mrb[0].mxu0
  %v306 = vadd.f32 %v68, %v305
  %v307 = vpop.f32.mrb[0].mxu0
  %v308 = vpop.f32.mrb[0].mxu0
  %v309 = vadd.f32 %v69, %v308
  %v310 = vpop.f32.mrb[0].mxu0
  %311 = vdwg.mxu0
  %v312 = vsel %vm264, %v306, -inf
  %313 = vmax.xlane.f32.xlu0 %v312
  %v314 = vpop.xlane.xlu0 %313
  %v315 = vsel %vm264, %v309, -inf
  %316 = vmax.xlane.f32.xlu0 %v315
  %v317 = vpop.xlane.xlu0 %316
  %v318 = vsub.f32 %v306, %v314
  %v319 = vsub.f32 %v309, %v317
  %v320 = vmul.f32 %v318, 1.442695
  %v321 = vpow.pop %v320
  %v322 = vmul.f32 %v319, 1.442695
  %v323 = vpow.pop %v322
  %v324 = vsel %vm264, %v321, 0.0
  %325 = vadd.xlane.f32.xlu0 %v324
  %v326 = vpop.xlane.xlu0 %325
  %v327 = vsel %vm264, %v323, 0.0
  %328 = vadd.xlane.f32.xlu0 %v327
  %v329 = vpop.xlane.xlu0 %328
  %v330 = vrcp.pop %v326
  %v331 = vrcp.pop %v329
  %v332 = vmul.f32 %v321, %v330
  %v333 = vmul.f32 %v323, %v331
  %v334 = vpack.c.bf16 %v333, %v332
  %v335 = vpack.c.bf16 %v259, %v256
  %v337 = vsel %vm264, %v334, 0
  %339 = vmatprep.subr.bf16.mxu0 0
  %340 = vmatpush1.bf16.msra.mxu0 %v335
  %341 = vmatprep.subr.bf16.mxu0 0
  %342 = vmatpush1.bf16.msra.mxu0 0
  %343 = vmatprep.subr.bf16.mxu0 0
  %344 = vmatpush1.bf16.msra.mxu0 0
  %345 = vmatprep.subr.bf16.mxu0 0
  %346 = vmatpush1.bf16.msra.mxu0 0
  %347 = vmatprep.subr.bf16.mxu0 0
  %348 = vmatpush1.bf16.msra.mxu0 0
  %349 = vmatprep.subr.bf16.mxu0 0
  %350 = vmatpush1.bf16.msra.mxu0 0
  %351 = vmatprep.subr.bf16.mxu0 0
  %352 = vmatpush1.bf16.msra.mxu0 0
  %353 = vmatprep.subr.bf16.mxu0 0
  %354 = vmatpush1.bf16.msra.mxu0 0
  %355 = vmatprep.subr.bf16.mxu0 0
  %356 = vmatpush1.bf16.msra.mxu0 0
  %357 = vmatprep.subr.bf16.mxu0 0
  %358 = vmatpush1.bf16.msra.mxu0 0
  %359 = vmatprep.subr.bf16.mxu0 0
  %360 = vmatpush1.bf16.msra.mxu0 0
  %361 = vmatprep.subr.bf16.mxu0 0
  %362 = vmatpush1.bf16.msra.mxu0 0
  %363 = vmatprep.subr.bf16.mxu0 0
  %364 = vmatpush1.bf16.msra.mxu0 0
  %365 = vmatprep.subr.bf16.mxu0 0
  %366 = vmatpush1.bf16.msra.mxu0 0
  %367 = vmatprep.subr.bf16.mxu0 0
  %368 = vmatpush1.bf16.msra.mxu0 0
  %369 = vmatprep.subr.bf16.mxu0 0
  %370 = vmatpush1.bf16.msra.mxu0 0
  %371 = vmatprep.mubr.bf16.mxu0 0
  %372 = vmatmul.mubr.bf16.gmra.mrb[0].mxu0 %v337
  %v373 = vpop.f32.mrb[0].mxu0
  %v374 = vadd.f32 0.0, %v373
  %v375 = vpop.f32.mrb[0].mxu0
  %v376 = vpop.f32.mrb[0].mxu0
  %v377 = vadd.f32 0.0, %v376
  %v378 = vpop.f32.mrb[0].mxu0
  %379 = vdwg.mxu0
  %v380 = vpack.c.bf16 %v377, %v374
  %s381 = scalar_lea.vmem %s3, 48
  %v382 = vld [vmem:[%s381] sm:$0xf]
  %v383 = vld [vmem:[%s381 + $0x4] sm:$0xf]
  %v384 = vld [vmem:[%s381 + $0x8] sm:$0xf]
  %v385 = vld [vmem:[%s381 + $0xc] sm:$0xf]
  %s386 = scalar_lea.vmem %s3, 64
  %v387 = vld [vmem:[%s386] sm:$0xf]
  %v388 = vld [vmem:[%s386 + $0x4] sm:$0xf]
  %v389 = vld [vmem:[%s386 + $0x8] sm:$0xf]
  %v390 = vld [vmem:[%s386 + $0xc] sm:$0xf]
  %v391 = vld [vmem:[%s5 + $0x5] sm:$0x1]
  %v392 = vlaneseq
  %v393 = vshrl.u32 %v392, 7
  %v394 = vsub.s32 0, %v393
  %v395 = vrot.slane %v391, %v394
  %v400 = vunpack.c.l.b16 %v387
  %v401 = vunpack.c.l.b16 %v388
  %v402 = vunpack.c.l.b16 %v389
  %v403 = vunpack.c.l.b16 %v390
  %v404 = vpack.c.b16 %v401, %v400
  %v405 = vpack.c.b16 %v403, %v402
  %408 = vmatprep.subr.bf16.mxu0 0
  %409 = vmatpush1.bf16.msra.mxu0 %v404
  %410 = vmatprep.subr.bf16.mxu0 0
  %411 = vmatpush1.bf16.msra.mxu0 %v405
  %412 = vmatprep.subr.bf16.mxu0 0
  %413 = vmatpush1.bf16.msra.mxu0 0
  %414 = vmatprep.subr.bf16.mxu0 0
  %415 = vmatpush1.bf16.msra.mxu0 0
  %416 = vmatprep.subr.bf16.mxu0 0
  %417 = vmatpush1.bf16.msra.mxu0 0
  %418 = vmatprep.subr.bf16.mxu0 0
  %419 = vmatpush1.bf16.msra.mxu0 0
  %420 = vmatprep.subr.bf16.mxu0 0
  %421 = vmatpush1.bf16.msra.mxu0 0
  %422 = vmatprep.subr.bf16.mxu0 0
  %423 = vmatpush1.bf16.msra.mxu0 0
  %424 = vmatprep.subr.bf16.mxu0 0
  %425 = vmatpush1.bf16.msra.mxu0 0
  %426 = vmatprep.subr.bf16.mxu0 0
  %427 = vmatpush1.bf16.msra.mxu0 0
  %428 = vmatprep.subr.bf16.mxu0 0
  %429 = vmatpush1.bf16.msra.mxu0 0
  %430 = vmatprep.subr.bf16.mxu0 0
  %431 = vmatpush1.bf16.msra.mxu0 0
  %432 = vmatprep.subr.bf16.mxu0 0
  %433 = vmatpush1.bf16.msra.mxu0 0
  %434 = vmatprep.subr.bf16.mxu0 0
  %435 = vmatpush1.bf16.msra.mxu0 0
  %436 = vmatprep.subr.bf16.mxu0 0
  %437 = vmatpush1.bf16.msra.mxu0 0
  %438 = vmatprep.subr.bf16.mxu0 0
  %439 = vmatpush1.bf16.msra.mxu0 0
  %440 = vmatprep.mubr.bf16.mxu0 0
  %441 = vmatmul.mubr.bf16.gmra.mrb[0].mxu0 %v93
  %v442 = vpop.f32.mrb[0].mxu0
  %v443 = vadd.f32 %v395, %v442
  %v444 = vpop.f32.mrb[0].mxu0
  %v445 = vpop.f32.mrb[0].mxu0
  %v446 = vadd.f32 %v395, %v445
  %v447 = vpop.f32.mrb[0].mxu0
  %448 = vdwg.mxu0
  %s449 = scalar_lea.vmem %s3, 80
  %v450 = vld [vmem:[%s449] sm:$0xf]
  %v451 = vld [vmem:[%s449 + $0x4] sm:$0xf]
  %v452 = vld [vmem:[%s449 + $0x8] sm:$0xf]
  %v453 = vld [vmem:[%s449 + $0xc] sm:$0xf]
  %v454 = vld [vmem:[%s5 + $0x6] sm:$0x1]
  %v455 = vlaneseq
  %v456 = vshrl.u32 %v455, 7
  %v457 = vsub.s32 0, %v456
  %v458 = vrot.slane %v454, %v457
  %v463 = vunpack.c.l.b16 %v450
  %v464 = vunpack.c.l.b16 %v451
  %v465 = vunpack.c.l.b16 %v452
  %v466 = vunpack.c.l.b16 %v453
  %v467 = vpack.c.b16 %v464, %v463
  %v468 = vpack.c.b16 %v466, %v465
  %471 = vmatprep.subr.bf16.mxu0 0
  %472 = vmatpush1.bf16.msra.mxu0 %v467
  %473 = vmatprep.subr.bf16.mxu0 0
  %474 = vmatpush1.bf16.msra.mxu0 %v468
  %475 = vmatprep.subr.bf16.mxu0 0
  %476 = vmatpush1.bf16.msra.mxu0 0
  %477 = vmatprep.subr.bf16.mxu0 0
  %478 = vmatpush1.bf16.msra.mxu0 0
  %479 = vmatprep.subr.bf16.mxu0 0
  %480 = vmatpush1.bf16.msra.mxu0 0
  %481 = vmatprep.subr.bf16.mxu0 0
  %482 = vmatpush1.bf16.msra.mxu0 0
  %483 = vmatprep.subr.bf16.mxu0 0
  %484 = vmatpush1.bf16.msra.mxu0 0
  %485 = vmatprep.subr.bf16.mxu0 0
  %486 = vmatpush1.bf16.msra.mxu0 0
  %487 = vmatprep.subr.bf16.mxu0 0
  %488 = vmatpush1.bf16.msra.mxu0 0
  %489 = vmatprep.subr.bf16.mxu0 0
  %490 = vmatpush1.bf16.msra.mxu0 0
  %491 = vmatprep.subr.bf16.mxu0 0
  %492 = vmatpush1.bf16.msra.mxu0 0
  %493 = vmatprep.subr.bf16.mxu0 0
  %494 = vmatpush1.bf16.msra.mxu0 0
  %495 = vmatprep.subr.bf16.mxu0 0
  %496 = vmatpush1.bf16.msra.mxu0 0
  %497 = vmatprep.subr.bf16.mxu0 0
  %498 = vmatpush1.bf16.msra.mxu0 0
  %499 = vmatprep.subr.bf16.mxu0 0
  %500 = vmatpush1.bf16.msra.mxu0 0
  %501 = vmatprep.subr.bf16.mxu0 0
  %502 = vmatpush1.bf16.msra.mxu0 0
  %503 = vmatprep.mubr.bf16.mxu0 0
  %504 = vmatmul.mubr.bf16.gmra.mrb[0].mxu0 %v93
  %v505 = vpop.f32.mrb[0].mxu0
  %v506 = vadd.f32 %v458, %v505
  %v507 = vpop.f32.mrb[0].mxu0
  %v508 = vpop.f32.mrb[0].mxu0
  %v509 = vadd.f32 %v458, %v508
  %v510 = vpop.f32.mrb[0].mxu0
  %511 = vdwg.mxu0
  %s512 = scalar_lea.vmem %s3, 96
  %v513 = vld [vmem:[%s512] sm:$0xf]
  %v514 = vld [vmem:[%s512 + $0x4] sm:$0xf]
  %v515 = vld [vmem:[%s512 + $0x8] sm:$0xf]
  %v516 = vld [vmem:[%s512 + $0xc] sm:$0xf]
  %v517 = vld [vmem:[%s5 + $0x7] sm:$0x1]
  %v518 = vlaneseq
  %v519 = vshrl.u32 %v518, 7
  %v520 = vsub.s32 0, %v519
  %v521 = vrot.slane %v517, %v520
  %v526 = vunpack.c.l.b16 %v513
  %v527 = vunpack.c.l.b16 %v514
  %v528 = vunpack.c.l.b16 %v515
  %v529 = vunpack.c.l.b16 %v516
  %v530 = vpack.c.b16 %v527, %v526
  %v531 = vpack.c.b16 %v529, %v528
  %534 = vmatprep.subr.bf16.mxu0 0
  %535 = vmatpush1.bf16.msra.mxu0 %v530
  %536 = vmatprep.subr.bf16.mxu0 0
  %537 = vmatpush1.bf16.msra.mxu0 %v531
  %538 = vmatprep.subr.bf16.mxu0 0
  %539 = vmatpush1.bf16.msra.mxu0 0
  %540 = vmatprep.subr.bf16.mxu0 0
  %541 = vmatpush1.bf16.msra.mxu0 0
  %542 = vmatprep.subr.bf16.mxu0 0
  %543 = vmatpush1.bf16.msra.mxu0 0
  %544 = vmatprep.subr.bf16.mxu0 0
  %545 = vmatpush1.bf16.msra.mxu0 0
  %546 = vmatprep.subr.bf16.mxu0 0
  %547 = vmatpush1.bf16.msra.mxu0 0
  %548 = vmatprep.subr.bf16.mxu0 0
  %549 = vmatpush1.bf16.msra.mxu0 0
  %550 = vmatprep.subr.bf16.mxu0 0
  %551 = vmatpush1.bf16.msra.mxu0 0
  %552 = vmatprep.subr.bf16.mxu0 0
  %553 = vmatpush1.bf16.msra.mxu0 0
  %554 = vmatprep.subr.bf16.mxu0 0
  %555 = vmatpush1.bf16.msra.mxu0 0
  %556 = vmatprep.subr.bf16.mxu0 0
  %557 = vmatpush1.bf16.msra.mxu0 0
  %558 = vmatprep.subr.bf16.mxu0 0
  %559 = vmatpush1.bf16.msra.mxu0 0
  %560 = vmatprep.subr.bf16.mxu0 0
  %561 = vmatpush1.bf16.msra.mxu0 0
  %562 = vmatprep.subr.bf16.mxu0 0
  %563 = vmatpush1.bf16.msra.mxu0 0
  %564 = vmatprep.subr.bf16.mxu0 0
  %565 = vmatpush1.bf16.msra.mxu0 0
  %566 = vmatprep.mubr.bf16.mxu0 0
  %567 = vmatmul.mubr.bf16.gmra.mrb[0].mxu0 %v93
  %v568 = vpop.f32.mrb[0].mxu0
  %v569 = vadd.f32 %v521, %v568
  %v570 = vpop.f32.mrb[0].mxu0
  %v571 = vpop.f32.mrb[0].mxu0
  %v572 = vadd.f32 %v521, %v571
  %v573 = vpop.f32.mrb[0].mxu0
  %574 = vdwg.mxu0
  %v575 = vpack.c.bf16 %v446, %v443
  %v576 = vpack.c.bf16 %v509, %v506
  %v578 = vsel %vm264, %v575, 0
  %v581 = vsel %vm264, %v576, 0
  %583 = vmatprep.subr.bf16.mxu0 0
  %584 = vmatpush1.bf16.xpose.msra.mxu0 %v581
  %585 = vmatprep.subr.bf16.mxu0 0
  %586 = vmatpush1.bf16.xpose.msra.mxu0 0
  %587 = vmatprep.subr.bf16.mxu0 0
  %588 = vmatpush1.bf16.xpose.msra.mxu0 0
  %589 = vmatprep.subr.bf16.mxu0 0
  %590 = vmatpush1.bf16.xpose.msra.mxu0 0
  %591 = vmatprep.subr.bf16.mxu0 0
  %592 = vmatpush1.bf16.xpose.msra.mxu0 0
  %593 = vmatprep.subr.bf16.mxu0 0
  %594 = vmatpush1.bf16.xpose.msra.mxu0 0
  %595 = vmatprep.subr.bf16.mxu0 0
  %596 = vmatpush1.bf16.xpose.msra.mxu0 0
  %597 = vmatprep.subr.bf16.mxu0 0
  %598 = vmatpush1.bf16.xpose.msra.mxu0 0
  %599 = vmatprep.subr.bf16.mxu0 0
  %600 = vmatpush1.bf16.xpose.msra.mxu0 0
  %601 = vmatprep.subr.bf16.mxu0 0
  %602 = vmatpush1.bf16.xpose.msra.mxu0 0
  %603 = vmatprep.subr.bf16.mxu0 0
  %604 = vmatpush1.bf16.xpose.msra.mxu0 0
  %605 = vmatprep.subr.bf16.mxu0 0
  %606 = vmatpush1.bf16.xpose.msra.mxu0 0
  %607 = vmatprep.subr.bf16.mxu0 0
  %608 = vmatpush1.bf16.xpose.msra.mxu0 0
  %609 = vmatprep.subr.bf16.mxu0 0
  %610 = vmatpush1.bf16.xpose.msra.mxu0 0
  %611 = vmatprep.subr.bf16.mxu0 0
  %612 = vmatpush1.bf16.xpose.msra.mxu0 0
  %613 = vmatprep.subr.bf16.mxu0 0
  %614 = vmatpush1.bf16.xpose.msra.mxu0 0
  %615 = vmatprep.mubr.bf16.mxu0 0
  %616 = vmatmul.mubr.bf16.gmra.mrb[0].mxu0 %v578
  %v617 = vpop.f32.mrb[0].mxu0
  %v618 = vadd.f32 %v68, %v617
  %v619 = vpop.f32.mrb[0].mxu0
  %v620 = vpop.f32.mrb[0].mxu0
  %v621 = vadd.f32 %v69, %v620
  %v622 = vpop.f32.mrb[0].mxu0
  %623 = vdwg.mxu0
  %v624 = vsel %vm264, %v618, -inf
  %625 = vmax.xlane.f32.xlu0 %v624
  %v626 = vpop.xlane.xlu0 %625
  %v627 = vsel %vm264, %v621, -inf
  %628 = vmax.xlane.f32.xlu0 %v627
  %v629 = vpop.xlane.xlu0 %628
  %v630 = vsub.f32 %v618, %v626
  %v631 = vsub.f32 %v621, %v629
  %v632 = vmul.f32 %v630, 1.442695
  %v633 = vpow.pop %v632
  %v634 = vmul.f32 %v631, 1.442695
  %v635 = vpow.pop %v634
  %v636 = vsel %vm264, %v633, 0.0
  %637 = vadd.xlane.f32.xlu0 %v636
  %v638 = vpop.xlane.xlu0 %637
  %v639 = vsel %vm264, %v635, 0.0
  %640 = vadd.xlane.f32.xlu0 %v639
  %v641 = vpop.xlane.xlu0 %640
  %v642 = vrcp.pop %v638
  %v643 = vrcp.pop %v641
  %v644 = vmul.f32 %v633, %v642
  %v645 = vmul.f32 %v635, %v643
  %v646 = vpack.c.bf16 %v645, %v644
  %v647 = vpack.c.bf16 %v572, %v569
  %v649 = vsel %vm264, %v646, 0
  %651 = vmatprep.subr.bf16.mxu0 0
  %652 = vmatpush1.bf16.msra.mxu0 %v647
  %653 = vmatprep.subr.bf16.mxu0 0
  %654 = vmatpush1.bf16.msra.mxu0 0
  %655 = vmatprep.subr.bf16.mxu0 0
  %656 = vmatpush1.bf16.msra.mxu0 0
  %657 = vmatprep.subr.bf16.mxu0 0
  %658 = vmatpush1.bf16.msra.mxu0 0
  %659 = vmatprep.subr.bf16.mxu0 0
  %660 = vmatpush1.bf16.msra.mxu0 0
  %661 = vmatprep.subr.bf16.mxu0 0
  %662 = vmatpush1.bf16.msra.mxu0 0
  %663 = vmatprep.subr.bf16.mxu0 0
  %664 = vmatpush1.bf16.msra.mxu0 0
  %665 = vmatprep.subr.bf16.mxu0 0
  %666 = vmatpush1.bf16.msra.mxu0 0
  %667 = vmatprep.subr.bf16.mxu0 0
  %668 = vmatpush1.bf16.msra.mxu0 0
  %669 = vmatprep.subr.bf16.mxu0 0
  %670 = vmatpush1.bf16.msra.mxu0 0
  %671 = vmatprep.subr.bf16.mxu0 0
  %672 = vmatpush1.bf16.msra.mxu0 0
  %673 = vmatprep.subr.bf16.mxu0 0
  %674 = vmatpush1.bf16.msra.mxu0 0
  %675 = vmatprep.subr.bf16.mxu0 0
  %676 = vmatpush1.bf16.msra.mxu0 0
  %677 = vmatprep.subr.bf16.mxu0 0
  %678 = vmatpush1.bf16.msra.mxu0 0
  %679 = vmatprep.subr.bf16.mxu0 0
  %680 = vmatpush1.bf16.msra.mxu0 0
  %681 = vmatprep.subr.bf16.mxu0 0
  %682 = vmatpush1.bf16.msra.mxu0 0
  %683 = vmatprep.mubr.bf16.mxu0 0
  %684 = vmatmul.mubr.bf16.gmra.mrb[0].mxu0 %v649
  %v685 = vpop.f32.mrb[0].mxu0
  %v686 = vadd.f32 0.0, %v685
  %v687 = vpop.f32.mrb[0].mxu0
  %v688 = vpop.f32.mrb[0].mxu0
  %v689 = vadd.f32 0.0, %v688
  %v690 = vpop.f32.mrb[0].mxu0
  %691 = vdwg.mxu0
  %v692 = vpack.c.bf16 %v689, %v686
  %s693 = scalar_lea.vmem %s3, 112
  %v694 = vld [vmem:[%s693] sm:$0xf]
  %v695 = vld [vmem:[%s693 + $0x4] sm:$0xf]
  %v696 = vld [vmem:[%s693 + $0x8] sm:$0xf]
  %v697 = vld [vmem:[%s693 + $0xc] sm:$0xf]
  %v702 = vunpack.c.l.b16 %v694
  %v703 = vunpack.c.l.b16 %v695
  %v704 = vunpack.c.l.b16 %v696
  %v705 = vunpack.c.l.b16 %v697
  %v706 = vpack.c.b16 %v703, %v702
  %v707 = vpack.c.b16 %v705, %v704
  %v709 = vsel %vm264, %v692, 0
  %v712 = vsel %vm264, %v706, 0
  %v715 = vsel %vm264, %v707, 0
  %717 = vmatprep.subr.bf16.mxu0 0
  %718 = vmatpush1.bf16.xpose.msra.mxu0 %v712
  %719 = vmatprep.subr.bf16.mxu0 0
  %720 = vmatpush1.bf16.xpose.msra.mxu0 %v715
  %721 = vmatprep.subr.bf16.mxu0 0
  %722 = vmatpush1.bf16.xpose.msra.mxu0 0
  %723 = vmatprep.subr.bf16.mxu0 0
  %724 = vmatpush1.bf16.xpose.msra.mxu0 0
  %725 = vmatprep.subr.bf16.mxu0 0
  %726 = vmatpush1.bf16.xpose.msra.mxu0 0
  %727 = vmatprep.subr.bf16.mxu0 0
  %728 = vmatpush1.bf16.xpose.msra.mxu0 0
  %729 = vmatprep.subr.bf16.mxu0 0
  %730 = vmatpush1.bf16.xpose.msra.mxu0 0
  %731 = vmatprep.subr.bf16.mxu0 0
  %732 = vmatpush1.bf16.xpose.msra.mxu0 0
  %733 = vmatprep.subr.bf16.mxu0 0
  %734 = vmatpush1.bf16.xpose.msra.mxu0 0
  %735 = vmatprep.subr.bf16.mxu0 0
  %736 = vmatpush1.bf16.xpose.msra.mxu0 0
  %737 = vmatprep.subr.bf16.mxu0 0
  %738 = vmatpush1.bf16.xpose.msra.mxu0 0
  %739 = vmatprep.subr.bf16.mxu0 0
  %740 = vmatpush1.bf16.xpose.msra.mxu0 0
  %741 = vmatprep.subr.bf16.mxu0 0
  %742 = vmatpush1.bf16.xpose.msra.mxu0 0
  %743 = vmatprep.subr.bf16.mxu0 0
  %744 = vmatpush1.bf16.xpose.msra.mxu0 0
  %745 = vmatprep.subr.bf16.mxu0 0
  %746 = vmatpush1.bf16.xpose.msra.mxu0 0
  %747 = vmatprep.subr.bf16.mxu0 0
  %748 = vmatpush1.bf16.xpose.msra.mxu0 0
  %749 = vmatprep.mubr.bf16.mxu0 0
  %750 = vmatmul.mubr.bf16.gmra.mrb[0].mxu0 %v709
  %v751 = vpop.f32.mrb[0].mxu0
  %v752 = vadd.f32 0.0, %v751
  %v753 = vpop.f32.mrb[0].mxu0
  %v754 = vpop.f32.mrb[0].mxu0
  %v755 = vadd.f32 0.0, %v754
  %v756 = vpop.f32.mrb[0].mxu0
  %757 = vdwg.mxu0
  %v762 = vunpack.c.l.b16 %v382
  %v763 = vunpack.c.l.b16 %v383
  %v764 = vunpack.c.l.b16 %v384
  %v765 = vunpack.c.l.b16 %v385
  %v766 = vpack.c.b16 %v763, %v762
  %v767 = vpack.c.b16 %v765, %v764
  %v769 = vsel %vm264, %v380, 0
  %v772 = vsel %vm264, %v766, 0
  %v775 = vsel %vm264, %v767, 0
  %777 = vmatprep.subr.bf16.mxu0 0
  %778 = vmatpush1.bf16.xpose.msra.mxu0 %v772
  %779 = vmatprep.subr.bf16.mxu0 0
  %780 = vmatpush1.bf16.xpose.msra.mxu0 %v775
  %781 = vmatprep.subr.bf16.mxu0 0
  %782 = vmatpush1.bf16.xpose.msra.mxu0 0
  %783 = vmatprep.subr.bf16.mxu0 0
  %784 = vmatpush1.bf16.xpose.msra.mxu0 0
  %785 = vmatprep.subr.bf16.mxu0 0
  %786 = vmatpush1.bf16.xpose.msra.mxu0 0
  %787 = vmatprep.subr.bf16.mxu0 0
  %788 = vmatpush1.bf16.xpose.msra.mxu0 0
  %789 = vmatprep.subr.bf16.mxu0 0
  %790 = vmatpush1.bf16.xpose.msra.mxu0 0
  %791 = vmatprep.subr.bf16.mxu0 0
  %792 = vmatpush1.bf16.xpose.msra.mxu0 0
  %793 = vmatprep.subr.bf16.mxu0 0
  %794 = vmatpush1.bf16.xpose.msra.mxu0 0
  %795 = vmatprep.subr.bf16.mxu0 0
  %796 = vmatpush1.bf16.xpose.msra.mxu0 0
  %797 = vmatprep.subr.bf16.mxu0 0
  %798 = vmatpush1.bf16.xpose.msra.mxu0 0
  %799 = vmatprep.subr.bf16.mxu0 0
  %800 = vmatpush1.bf16.xpose.msra.mxu0 0
  %801 = vmatprep.subr.bf16.mxu0 0
  %802 = vmatpush1.bf16.xpose.msra.mxu0 0
  %803 = vmatprep.subr.bf16.mxu0 0
  %804 = vmatpush1.bf16.xpose.msra.mxu0 0
  %805 = vmatprep.subr.bf16.mxu0 0
  %806 = vmatpush1.bf16.xpose.msra.mxu0 0
  %807 = vmatprep.subr.bf16.mxu0 0
  %808 = vmatpush1.bf16.xpose.msra.mxu0 0
  %809 = vmatprep.mubr.bf16.mxu0 0
  %810 = vmatmul.mubr.bf16.gmra.mrb[0].mxu0 %v769
  %v811 = vpop.f32.mrb[0].mxu0
  %v812 = vadd.f32 %v752, %v811
  %v813 = vpop.f32.mrb[0].mxu0
  %v814 = vpop.f32.mrb[0].mxu0
  %v815 = vadd.f32 %v755, %v814
  %v816 = vpop.f32.mrb[0].mxu0
  %817 = vdwg.mxu0
  %v818 = vld [vmem:[%s5 + $0x8] sm:$0x1]
  %v819 = vlaneseq
  %v820 = vshrl.u32 %v819, 7
  %v821 = vsub.s32 0, %v820
  %v822 = vrot.slane %v818, %v821
  %v823 = vadd.f32 %v812, %v822
  %v824 = vadd.f32 %v815, %v822
  %v825 = vadd.f32 %v823, %v66
  %v826 = vadd.f32 %v824, %v67
  %v827 = vld [vmem:[%s5 + $0x9] sm:$0x1]
  %v828 = vld [vmem:[%s5 + $0xa] sm:$0x1]
  %v829 = vsel %vm28, %v825, 0.0
  %830 = vadd.xlane.f32.xlu0 %v829
  %v831 = vpop.xlane.xlu0 %830
  %v832 = vsel %vm28, %v826, 0.0
  %833 = vadd.xlane.f32.xlu0 %v832
  %v834 = vpop.xlane.xlu0 %833
  %v835 = vmul.f32 %v831, %v35
  %v836 = vmul.f32 %v834, %v35
  %v837 = vsub.f32 %v825, %v835
  %v838 = vsub.f32 %v826, %v836
  %v839 = vmul.f32 %v837, %v837
  %v840 = vmul.f32 %v838, %v838
  %v841 = vsel %vm28, %v839, 0.0
  %842 = vadd.xlane.f32.xlu0 %v841
  %v843 = vpop.xlane.xlu0 %842
  %v844 = vsel %vm28, %v840, 0.0
  %845 = vadd.xlane.f32.xlu0 %v844
  %v846 = vpop.xlane.xlu0 %845
  %v847 = vmul.f32 %v843, %v35
  %v848 = vmul.f32 %v846, %v35
  %v849 = vadd.f32 %v847, 1e-12
  %v850 = vadd.f32 %v848, 1e-12
  %v851 = vrsqrt.pop %v849
  %v852 = vrsqrt.pop %v850
  %v853 = vmul.f32 %v837, %v851
  %v854 = vmul.f32 %v838, %v852
  %v855 = vlaneseq
  %v856 = vshrl.u32 %v855, 7
  %v857 = vsub.s32 0, %v856
  %v858 = vrot.slane %v827, %v857
  %v859 = vmul.f32 %v853, %v858
  %v860 = vmul.f32 %v854, %v858
  %v861 = vlaneseq
  %v862 = vshrl.u32 %v861, 7
  %v863 = vsub.s32 0, %v862
  %v864 = vrot.slane %v828, %v863
  %v865 = vadd.f32 %v859, %v864
  %v866 = vadd.f32 %v860, %v864
  %v867 = vpack.c.bf16 %v866, %v865
  %v868 = vld [vmem:[%s4] sm:$0xf]
  %v869 = vld [vmem:[%s4 + $0x4] sm:$0xf]
  %v870 = vld [vmem:[%s4 + $0x8] sm:$0xf]
  %v871 = vld [vmem:[%s4 + $0xc] sm:$0xf]
  %v872 = vld [vmem:[%s4 + $0x10] sm:$0xf]
  %v873 = vld [vmem:[%s4 + $0x14] sm:$0xf]
  %v874 = vld [vmem:[%s4 + $0x18] sm:$0xf]
  %v875 = vld [vmem:[%s4 + $0x1c] sm:$0xf]
  %v876 = vld [vmem:[%s5 + $0xb] sm:$0x1]
  %v877 = vlaneseq
  %v878 = vshrl.u32 %v877, 7
  %v879 = vsub.s32 0, %v878
  %v880 = vrot.slane %v876, %v879
  %v889 = vunpack.c.l.b16 %v868
  %v890 = vunpack.c.l.b16 %v869
  %v891 = vunpack.c.l.b16 %v870
  %v892 = vunpack.c.l.b16 %v871
  %v893 = vunpack.c.l.b16 %v872
  %v894 = vunpack.c.l.b16 %v873
  %v895 = vunpack.c.l.b16 %v874
  %v896 = vunpack.c.l.b16 %v875
  %v897 = vpack.c.b16 %v890, %v889
  %v898 = vpack.c.b16 %v892, %v891
  %v899 = vpack.c.b16 %v894, %v893
  %v900 = vpack.c.b16 %v896, %v895
  %v902 = vsel %vm28, %v867, 0
  %v905 = vsel %vm28, %v897, 0
  %v908 = vsel %vm28, %v898, 0
  %v911 = vsel %vm28, %v899, 0
  %v914 = vsel %vm28, %v900, 0
  %916 = vmatprep.subr.bf16.mxu0 0
  %917 = vmatpush1.bf16.xpose.msra.mxu0 %v905
  %918 = vmatprep.subr.bf16.mxu0 0
  %919 = vmatpush1.bf16.xpose.msra.mxu0 %v908
  %920 = vmatprep.subr.bf16.mxu0 0
  %921 = vmatpush1.bf16.xpose.msra.mxu0 %v911
  %922 = vmatprep.subr.bf16.mxu0 0
  %923 = vmatpush1.bf16.xpose.msra.mxu0 %v914
  %924 = vmatprep.subr.bf16.mxu0 0
  %925 = vmatpush1.bf16.xpose.msra.mxu0 0
  %926 = vmatprep.subr.bf16.mxu0 0
  %927 = vmatpush1.bf16.xpose.msra.mxu0 0
  %928 = vmatprep.subr.bf16.mxu0 0
  %929 = vmatpush1.bf16.xpose.msra.mxu0 0
  %930 = vmatprep.subr.bf16.mxu0 0
  %931 = vmatpush1.bf16.xpose.msra.mxu0 0
  %932 = vmatprep.subr.bf16.mxu0 0
  %933 = vmatpush1.bf16.xpose.msra.mxu0 0
  %934 = vmatprep.subr.bf16.mxu0 0
  %935 = vmatpush1.bf16.xpose.msra.mxu0 0
  %936 = vmatprep.subr.bf16.mxu0 0
  %937 = vmatpush1.bf16.xpose.msra.mxu0 0
  %938 = vmatprep.subr.bf16.mxu0 0
  %939 = vmatpush1.bf16.xpose.msra.mxu0 0
  %940 = vmatprep.subr.bf16.mxu0 0
  %941 = vmatpush1.bf16.xpose.msra.mxu0 0
  %942 = vmatprep.subr.bf16.mxu0 0
  %943 = vmatpush1.bf16.xpose.msra.mxu0 0
  %944 = vmatprep.subr.bf16.mxu0 0
  %945 = vmatpush1.bf16.xpose.msra.mxu0 0
  %946 = vmatprep.subr.bf16.mxu0 0
  %947 = vmatpush1.bf16.xpose.msra.mxu0 0
  %948 = vmatprep.mubr.bf16.mxu0 0
  %949 = vmatmul.mubr.bf16.gmra.mrb[0].mxu0 %v902
  %v950 = vpop.f32.mrb[0].mxu0
  %v951 = vadd.f32 %v880, %v950
  %v952 = vpop.f32.mrb[0].mxu0
  %v953 = vpop.f32.mrb[0].mxu0
  %v954 = vadd.f32 %v880, %v953
  %v955 = vpop.f32.mrb[0].mxu0
  %956 = vdwg.mxu0
  %v957 = vmul.f32 %v951, 0.5
  %v958 = vmul.f32 %v954, 0.5
  %v959 = vmul.f32 %v951, 0.044715
  %v960 = vmul.f32 %v954, 0.044715
  %v961 = vmul.f32 %v959, %v951
  %v962 = vmul.f32 %v960, %v954
  %v963 = vmul.f32 %v961, %v951
  %v964 = vmul.f32 %v962, %v954
  %v965 = vadd.f32 %v951, %v963
  %v966 = vadd.f32 %v954, %v964
  %v967 = vmul.f32 %v965, 0.7978846
  %v968 = vmul.f32 %v966, 0.7978846
  %v969 = vtanh.pop %v967
  %v970 = vtanh.pop %v968
  %v971 = vadd.f32 %v969, 1.0
  %v972 = vadd.f32 %v970, 1.0
  %v973 = vmul.f32 %v957, %v971
  %v974 = vmul.f32 %v958, %v972
  %v975 = vpack.c.bf16 %v974, %v973
  %s976 = scalar_lea.vmem %s4, 32
  %v977 = vld [vmem:[%s976] sm:$0xf]
  %v978 = vld [vmem:[%s976 + $0x4] sm:$0xf]
  %v979 = vld [vmem:[%s976 + $0x8] sm:$0xf]
  %v980 = vld [vmem:[%s976 + $0xc] sm:$0xf]
  %v981 = vld [vmem:[%s976 + $0x10] sm:$0xf]
  %v982 = vld [vmem:[%s976 + $0x14] sm:$0xf]
  %v983 = vld [vmem:[%s976 + $0x18] sm:$0xf]
  %v984 = vld [vmem:[%s976 + $0x1c] sm:$0xf]
  %v985 = vld [vmem:[%s5 + $0xc] sm:$0x1]
  %v986 = vlaneseq
  %v987 = vshrl.u32 %v986, 7
  %v988 = vsub.s32 0, %v987
  %v989 = vrot.slane %v985, %v988
  %v998 = vunpack.c.l.b16 %v977
  %v999 = vunpack.c.l.b16 %v978
  %v1000 = vunpack.c.l.b16 %v979
  %v1001 = vunpack.c.l.b16 %v980
  %v1002 = vunpack.c.l.b16 %v981
  %v1003 = vunpack.c.l.b16 %v982
  %v1004 = vunpack.c.l.b16 %v983
  %v1005 = vunpack.c.l.b16 %v984
  %v1006 = vpack.c.b16 %v999, %v998
  %v1007 = vpack.c.b16 %v1001, %v1000
  %v1008 = vpack.c.b16 %v1003, %v1002
  %v1009 = vpack.c.b16 %v1005, %v1004
  %vm1014 = vcmask 523264
  %v1016 = vsel %vm1014, %v975, 0
  %1018 = vmatprep.subr.bf16.mxu0 0
  %1019 = vmatpush1.bf16.msra.mxu0 %v1006
  %1020 = vmatprep.subr.bf16.mxu0 0
  %1021 = vmatpush1.bf16.msra.mxu0 %v1007
  %1022 = vmatprep.subr.bf16.mxu0 0
  %1023 = vmatpush1.bf16.msra.mxu0 %v1008
  %1024 = vmatprep.subr.bf16.mxu0 0
  %1025 = vmatpush1.bf16.msra.mxu0 %v1009
  %1026 = vmatprep.subr.bf16.mxu0 0
  %1027 = vmatpush1.bf16.msra.mxu0 0
  %1028 = vmatprep.subr.bf16.mxu0 0
  %1029 = vmatpush1.bf16.msra.mxu0 0
  %1030 = vmatprep.subr.bf16.mxu0 0
  %1031 = vmatpush1.bf16.msra.mxu0 0
  %1032 = vmatprep.subr.bf16.mxu0 0
  %1033 = vmatpush1.bf16.msra.mxu0 0
  %1034 = vmatprep.subr.bf16.mxu0 0
  %1035 = vmatpush1.bf16.msra.mxu0 0
  %1036 = vmatprep.subr.bf16.mxu0 0
  %1037 = vmatpush1.bf16.msra.mxu0 0
  %1038 = vmatprep.subr.bf16.mxu0 0
  %1039 = vmatpush1.bf16.msra.mxu0 0
  %1040 = vmatprep.subr.bf16.mxu0 0
  %1041 = vmatpush1.bf16.msra.mxu0 0
  %1042 = vmatprep.subr.bf16.mxu0 0
  %1043 = vmatpush1.bf16.msra.mxu0 0
  %1044 = vmatprep.subr.bf16.mxu0 0
  %1045 = vmatpush1.bf16.msra.mxu0 0
  %1046 = vmatprep.subr.bf16.mxu0 0
  %1047 = vmatpush1.bf16.msra.mxu0 0
  %1048 = vmatprep.subr.bf16.mxu0 0
  %1049 = vmatpush1.bf16.msra.mxu0 0
  %1050 = vmatprep.mubr.bf16.mxu0 0
  %1051 = vmatmul.mubr.bf16.gmra.mrb[0].mxu0 %v1016
  %v1052 = vpop.f32.mrb[0].mxu0
  %v1053 = vadd.f32 %v989, %v1052
  %v1054 = vpop.f32.mrb[0].mxu0
  %v1055 = vpop.f32.mrb[0].mxu0
  %v1056 = vadd.f32 %v989, %v1055
  %v1057 = vpop.f32.mrb[0].mxu0
  %1058 = vdwg.mxu0
  %v1059 = vadd.f32 %v1053, %v865
  %v1060 = vadd.f32 %v1056, %v866
  %v1061 = vld [vmem:[%s5 + $0xd] sm:$0x1]
  %v1062 = vld [vmem:[%s5 + $0xe] sm:$0x1]
  %v1063 = vsel %vm28, %v1059, 0.0
  %1064 = vadd.xlane.f32.xlu0 %v1063
  %v1065 = vpop.xlane.xlu0 %1064
  %v1066 = vsel %vm28, %v1060, 0.0
  %1067 = vadd.xlane.f32.xlu0 %v1066
  %v1068 = vpop.xlane.xlu0 %1067
  %v1069 = vmul.f32 %v1065, %v35
  %v1070 = vmul.f32 %v1068, %v35
  %v1071 = vsub.f32 %v1059, %v1069
  %v1072 = vsub.f32 %v1060, %v1070
  %v1073 = vmul.f32 %v1071, %v1071
  %v1074 = vmul.f32 %v1072, %v1072
  %v1075 = vsel %vm28, %v1073, 0.0
  %1076 = vadd.xlane.f32.xlu0 %v1075
  %v1077 = vpop.xlane.xlu0 %1076
  %v1078 = vsel %vm28, %v1074, 0.0
  %1079 = vadd.xlane.f32.xlu0 %v1078
  %v1080 = vpop.xlane.xlu0 %1079
  %v1081 = vmul.f32 %v1077, %v35
  %v1082 = vmul.f32 %v1080, %v35
  %v1083 = vadd.f32 %v1081, 1e-12
  %v1084 = vadd.f32 %v1082, 1e-12
  %v1085 = vrsqrt.pop %v1083
  %v1086 = vrsqrt.pop %v1084
  %v1087 = vmul.f32 %v1071, %v1085
  %v1088 = vmul.f32 %v1072, %v1086
  %v1089 = vlaneseq
  %v1090 = vshrl.u32 %v1089, 7
  %v1091 = vsub.s32 0, %v1090
  %v1092 = vrot.slane %v1061, %v1091
  %v1093 = vmul.f32 %v1087, %v1092
  %v1094 = vmul.f32 %v1088, %v1092
  %v1095 = vlaneseq
  %v1096 = vshrl.u32 %v1095, 7
  %v1097 = vsub.s32 0, %v1096
  %v1098 = vrot.slane %v1062, %v1097
  %v1099 = vadd.f32 %v1093, %v1098
  %v1100 = vadd.f32 %v1094, %v1098
  %v1101 = vpack.c.bf16 %v1100, %v1099
  %s1102 = scalar_lea.vmem %s3, 128
  %v1103 = vld [vmem:[%s1102] sm:$0xf]
  %v1104 = vld [vmem:[%s1102 + $0x4] sm:$0xf]
  %v1105 = vld [vmem:[%s1102 + $0x8] sm:$0xf]
  %v1106 = vld [vmem:[%s1102 + $0xc] sm:$0xf]
  %v1107 = vld [vmem:[%s5 + $0xf] sm:$0x1]
  %v1108 = vlaneseq
  %v1109 = vshrl.u32 %v1108, 7
  %v1110 = vsub.s32 0, %v1109
  %v1111 = vrot.slane %v1107, %v1110
  %v1116 = vunpack.c.l.b16 %v1103
  %v1117 = vunpack.c.l.b16 %v1104
  %v1118 = vunpack.c.l.b16 %v1105
  %v1119 = vunpack.c.l.b16 %v1106
  %v1120 = vpack.c.b16 %v1117, %v1116
  %v1121 = vpack.c.b16 %v1119, %v1118
  %v1125 = vsel %vm28, %v1101, 0
  %1127 = vmatprep.subr.bf16.mxu0 0
  %1128 = vmatpush1.bf16.msra.mxu0 %v1120
  %1129 = vmatprep.subr.bf16.mxu0 0
  %1130 = vmatpush1.bf16.msra.mxu0 %v1121
  %1131 = vmatprep.subr.bf16.mxu0 0
  %1132 = vmatpush1.bf16.msra.mxu0 0
  %1133 = vmatprep.subr.bf16.mxu0 0
  %1134 = vmatpush1.bf16.msra.mxu0 0
  %1135 = vmatprep.subr.bf16.mxu0 0
  %1136 = vmatpush1.bf16.msra.mxu0 0
  %1137 = vmatprep.subr.bf16.mxu0 0
  %1138 = vmatpush1.bf16.msra.mxu0 0
  %1139 = vmatprep.subr.bf16.mxu0 0
  %1140 = vmatpush1.bf16.msra.mxu0 0
  %1141 = vmatprep.subr.bf16.mxu0 0
  %1142 = vmatpush1.bf16.msra.mxu0 0
  %1143 = vmatprep.subr.bf16.mxu0 0
  %1144 = vmatpush1.bf16.msra.mxu0 0
  %1145 = vmatprep.subr.bf16.mxu0 0
  %1146 = vmatpush1.bf16.msra.mxu0 0
  %1147 = vmatprep.subr.bf16.mxu0 0
  %1148 = vmatpush1.bf16.msra.mxu0 0
  %1149 = vmatprep.subr.bf16.mxu0 0
  %1150 = vmatpush1.bf16.msra.mxu0 0
  %1151 = vmatprep.subr.bf16.mxu0 0
  %1152 = vmatpush1.bf16.msra.mxu0 0
  %1153 = vmatprep.subr.bf16.mxu0 0
  %1154 = vmatpush1.bf16.msra.mxu0 0
  %1155 = vmatprep.subr.bf16.mxu0 0
  %1156 = vmatpush1.bf16.msra.mxu0 0
  %1157 = vmatprep.subr.bf16.mxu0 0
  %1158 = vmatpush1.bf16.msra.mxu0 0
  %1159 = vmatprep.mubr.bf16.mxu0 0
  %1160 = vmatmul.mubr.bf16.gmra.mrb[0].mxu0 %v1125
  %v1161 = vpop.f32.mrb[0].mxu0
  %v1162 = vadd.f32 %v1111, %v1161
  %v1163 = vpop.f32.mrb[0].mxu0
  %v1164 = vpop.f32.mrb[0].mxu0
  %v1165 = vadd.f32 %v1111, %v1164
  %v1166 = vpop.f32.mrb[0].mxu0
  %1167 = vdwg.mxu0
  %s1168 = scalar_lea.vmem %s3, 144
  %v1169 = vld [vmem:[%s1168] sm:$0xf]
  %v1170 = vld [vmem:[%s1168 + $0x4] sm:$0xf]
  %v1171 = vld [vmem:[%s1168 + $0x8] sm:$0xf]
  %v1172 = vld [vmem:[%s1168 + $0xc] sm:$0xf]
  %v1173 = vld [vmem:[%s5 + $0x10] sm:$0x1]
  %v1174 = vlaneseq
  %v1175 = vshrl.u32 %v1174, 7
  %v1176 = vsub.s32 0, %v1175
  %v1177 = vrot.slane %v1173, %v1176
  %v1182 = vunpack.c.l.b16 %v1169
  %v1183 = vunpack.c.l.b16 %v1170
  %v1184 = vunpack.c.l.b16 %v1171
  %v1185 = vunpack.c.l.b16 %v1172
  %v1186 = vpack.c.b16 %v1183, %v1182
  %v1187 = vpack.c.b16 %v1185, %v1184
  %1190 = vmatprep.subr.bf16.mxu0 0
  %1191 = vmatpush1.bf16.msra.mxu0 %v1186
  %1192 = vmatprep.subr.bf16.mxu0 0
  %1193 = vmatpush1.bf16.msra.mxu0 %v1187
  %1194 = vmatprep.subr.bf16.mxu0 0
  %1195 = vmatpush1.bf16.msra.mxu0 0
  %1196 = vmatprep.subr.bf16.mxu0 0
  %1197 = vmatpush1.bf16.msra.mxu0 0
  %1198 = vmatprep.subr.bf16.mxu0 0
  %1199 = vmatpush1.bf16.msra.mxu0 0
  %1200 = vmatprep.subr.bf16.mxu0 0
  %1201 = vmatpush1.bf16.msra.mxu0 0
  %1202 = vmatprep.subr.bf16.mxu0 0
  %1203 = vmatpush1.bf16.msra.mxu0 0
  %1204 = vmatprep.subr.bf16.mxu0 0
  %1205 = vmatpush1.bf16.msra.mxu0 0
  %1206 = vmatprep.subr.bf16.mxu0 0
  %1207 = vmatpush1.bf16.msra.mxu0 0
  %1208 = vmatprep.subr.bf16.mxu0 0
  %1209 = vmatpush1.bf16.msra.mxu0 0
  %1210 = vmatprep.subr.bf16.mxu0 0
  %1211 = vmatpush1.bf16.msra.mxu0 0
  %1212 = vmatprep.subr.bf16.mxu0 0
  %1213 = vmatpush1.bf16.msra.mxu0 0
  %1214 = vmatprep.subr.bf16.mxu0 0
  %1215 = vmatpush1.bf16.msra.mxu0 0
  %1216 = vmatprep.subr.bf16.mxu0 0
  %1217 = vmatpush1.bf16.msra.mxu0 0
  %1218 = vmatprep.subr.bf16.mxu0 0
  %1219 = vmatpush1.bf16.msra.mxu0 0
  %1220 = vmatprep.subr.bf16.mxu0 0
  %1221 = vmatpush1.bf16.msra.mxu0 0
  %1222 = vmatprep.mubr.bf16.mxu0 0
  %1223 = vmatmul.mubr.bf16.gmra.mrb[0].mxu0 %v1125
  %v1224 = vpop.f32.mrb[0].mxu0
  %v1225 = vadd.f32 %v1177, %v1224
  %v1226 = vpop.f32.mrb[0].mxu0
  %v1227 = vpop.f32.mrb[0].mxu0
  %v1228 = vadd.f32 %v1177, %v1227
  %v1229 = vpop.f32.mrb[0].mxu0
  %1230 = vdwg.mxu0
  %s1231 = scalar_lea.vmem %s3, 160
  %v1232 = vld [vmem:[%s1231] sm:$0xf]
  %v1233 = vld [vmem:[%s1231 + $0x4] sm:$0xf]
  %v1234 = vld [vmem:[%s1231 + $0x8] sm:$0xf]
  %v1235 = vld [vmem:[%s1231 + $0xc] sm:$0xf]
  %v1236 = vld [vmem:[%s5 + $0x11] sm:$0x1]
  %v1237 = vlaneseq
  %v1238 = vshrl.u32 %v1237, 7
  %v1239 = vsub.s32 0, %v1238
  %v1240 = vrot.slane %v1236, %v1239
  %v1245 = vunpack.c.l.b16 %v1232
  %v1246 = vunpack.c.l.b16 %v1233
  %v1247 = vunpack.c.l.b16 %v1234
  %v1248 = vunpack.c.l.b16 %v1235
  %v1249 = vpack.c.b16 %v1246, %v1245
  %v1250 = vpack.c.b16 %v1248, %v1247
  %1253 = vmatprep.subr.bf16.mxu0 0
  %1254 = vmatpush1.bf16.msra.mxu0 %v1249
  %1255 = vmatprep.subr.bf16.mxu0 0
  %1256 = vmatpush1.bf16.msra.mxu0 %v1250
  %1257 = vmatprep.subr.bf16.mxu0 0
  %1258 = vmatpush1.bf16.msra.mxu0 0
  %1259 = vmatprep.subr.bf16.mxu0 0
  %1260 = vmatpush1.bf16.msra.mxu0 0
  %1261 = vmatprep.subr.bf16.mxu0 0
  %1262 = vmatpush1.bf16.msra.mxu0 0
  %1263 = vmatprep.subr.bf16.mxu0 0
  %1264 = vmatpush1.bf16.msra.mxu0 0
  %1265 = vmatprep.subr.bf16.mxu0 0
  %1266 = vmatpush1.bf16.msra.mxu0 0
  %1267 = vmatprep.subr.bf16.mxu0 0
  %1268 = vmatpush1.bf16.msra.mxu0 0
  %1269 = vmatprep.subr.bf16.mxu0 0
  %1270 = vmatpush1.bf16.msra.mxu0 0
  %1271 = vmatprep.subr.bf16.mxu0 0
  %1272 = vmatpush1.bf16.msra.mxu0 0
  %1273 = vmatprep.subr.bf16.mxu0 0
  %1274 = vmatpush1.bf16.msra.mxu0 0
  %1275 = vmatprep.subr.bf16.mxu0 0
  %1276 = vmatpush1.bf16.msra.mxu0 0
  %1277 = vmatprep.subr.bf16.mxu0 0
  %1278 = vmatpush1.bf16.msra.mxu0 0
  %1279 = vmatprep.subr.bf16.mxu0 0
  %1280 = vmatpush1.bf16.msra.mxu0 0
  %1281 = vmatprep.subr.bf16.mxu0 0
  %1282 = vmatpush1.bf16.msra.mxu0 0
  %1283 = vmatprep.subr.bf16.mxu0 0
  %1284 = vmatpush1.bf16.msra.mxu0 0
  %1285 = vmatprep.mubr.bf16.mxu0 0
  %1286 = vmatmul.mubr.bf16.gmra.mrb[0].mxu0 %v1125
  %v1287 = vpop.f32.mrb[0].mxu0
  %v1288 = vadd.f32 %v1240, %v1287
  %v1289 = vpop.f32.mrb[0].mxu0
  %v1290 = vpop.f32.mrb[0].mxu0
  %v1291 = vadd.f32 %v1240, %v1290
  %v1292 = vpop.f32.mrb[0].mxu0
  %1293 = vdwg.mxu0
  %v1294 = vpack.c.bf16 %v1165, %v1162
  %v1295 = vpack.c.bf16 %v1228, %v1225
  %v1297 = vsel %vm264, %v1294, 0
  %v1300 = vsel %vm264, %v1295, 0
  %1302 = vmatprep.subr.bf16.mxu0 0
  %1303 = vmatpush1.bf16.xpose.msra.mxu0 %v1300
  %1304 = vmatprep.subr.bf16.mxu0 0
  %1305 = vmatpush1.bf16.xpose.msra.mxu0 0
  %1306 = vmatprep.subr.bf16.mxu0 0
  %1307 = vmatpush1.bf16.xpose.msra.mxu0 0
  %1308 = vmatprep.subr.bf16.mxu0 0
  %1309 = vmatpush1.bf16.xpose.msra.mxu0 0
  %1310 = vmatprep.subr.bf16.mxu0 0
  %1311 = vmatpush1.bf16.xpose.msra.mxu0 0
  %1312 = vmatprep.subr.bf16.mxu0 0
  %1313 = vmatpush1.bf16.xpose.msra.mxu0 0
  %1314 = vmatprep.subr.bf16.mxu0 0
  %1315 = vmatpush1.bf16.xpose.msra.mxu0 0
  %1316 = vmatprep.subr.bf16.mxu0 0
  %1317 = vmatpush1.bf16.xpose.msra.mxu0 0
  %1318 = vmatprep.subr.bf16.mxu0 0
  %1319 = vmatpush1.bf16.xpose.msra.mxu0 0
  %1320 = vmatprep.subr.bf16.mxu0 0
  %1321 = vmatpush1.bf16.xpose.msra.mxu0 0
  %1322 = vmatprep.subr.bf16.mxu0 0
  %1323 = vmatpush1.bf16.xpose.msra.mxu0 0
  %1324 = vmatprep.subr.bf16.mxu0 0
  %1325 = vmatpush1.bf16.xpose.msra.mxu0 0
  %1326 = vmatprep.subr.bf16.mxu0 0
  %1327 = vmatpush1.bf16.xpose.msra.mxu0 0
  %1328 = vmatprep.subr.bf16.mxu0 0
  %1329 = vmatpush1.bf16.xpose.msra.mxu0 0
  %1330 = vmatprep.subr.bf16.mxu0 0
  %1331 = vmatpush1.bf16.xpose.msra.mxu0 0
  %1332 = vmatprep.subr.bf16.mxu0 0
  %1333 = vmatpush1.bf16.xpose.msra.mxu0 0
  %1334 = vmatprep.mubr.bf16.mxu0 0
  %1335 = vmatmul.mubr.bf16.gmra.mrb[0].mxu0 %v1297
  %v1336 = vpop.f32.mrb[0].mxu0
  %v1337 = vadd.f32 %v68, %v1336
  %v1338 = vpop.f32.mrb[0].mxu0
  %v1339 = vpop.f32.mrb[0].mxu0
  %v1340 = vadd.f32 %v69, %v1339
  %v1341 = vpop.f32.mrb[0].mxu0
  %1342 = vdwg.mxu0
  %v1343 = vsel %vm264, %v1337, -inf
  %1344 = vmax.xlane.f32.xlu0 %v1343
  %v1345 = vpop.xlane.xlu0 %1344
  %v1346 = vsel %vm264, %v1340, -inf
  %1347 = vmax.xlane.f32.xlu0 %v1346
  %v1348 = vpop.xlane.xlu0 %1347
  %v1349 = vsub.f32 %v1337, %v1345
  %v1350 = vsub.f32 %v1340, %v1348
  %v1351 = vmul.f32 %v1349, 1.442695
  %v1352 = vpow.pop %v1351
  %v1353 = vmul.f32 %v1350, 1.442695
  %v1354 = vpow.pop %v1353
  %v1355 = vsel %vm264, %v1352, 0.0
  %1356 = vadd.xlane.f32.xlu0 %v1355
  %v1357 = vpop.xlane.xlu0 %1356
  %v1358 = vsel %vm264, %v1354, 0.0
  %1359 = vadd.xlane.f32.xlu0 %v1358
  %v1360 = vpop.xlane.xlu0 %1359
  %v1361 = vrcp.pop %v1357
  %v1362 = vrcp.pop %v1360
  %v1363 = vmul.f32 %v1352, %v1361
  %v1364 = vmul.f32 %v1354, %v1362
  %v1365 = vpack.c.bf16 %v1364, %v1363
  %v1366 = vpack.c.bf16 %v1291, %v1288
  %v1368 = vsel %vm264, %v1365, 0
  %1370 = vmatprep.subr.bf16.mxu0 0
  %1371 = vmatpush1.bf16.msra.mxu0 %v1366
  %1372 = vmatprep.subr.bf16.mxu0 0
  %1373 = vmatpush1.bf16.msra.mxu0 0
  %1374 = vmatprep.subr.bf16.mxu0 0
  %1375 = vmatpush1.bf16.msra.mxu0 0
  %1376 = vmatprep.subr.bf16.mxu0 0
  %1377 = vmatpush1.bf16.msra.mxu0 0
  %1378 = vmatprep.subr.bf16.mxu0 0
  %1379 = vmatpush1.bf16.msra.mxu0 0
  %1380 = vmatprep.subr.bf16.mxu0 0
  %1381 = vmatpush1.bf16.msra.mxu0 0
  %1382 = vmatprep.subr.bf16.mxu0 0
  %1383 = vmatpush1.bf16.msra.mxu0 0
  %1384 = vmatprep.subr.bf16.mxu0 0
  %1385 = vmatpush1.bf16.msra.mxu0 0
  %1386 = vmatprep.subr.bf16.mxu0 0
  %1387 = vmatpush1.bf16.msra.mxu0 0
  %1388 = vmatprep.subr.bf16.mxu0 0
  %1389 = vmatpush1.bf16.msra.mxu0 0
  %1390 = vmatprep.subr.bf16.mxu0 0
  %1391 = vmatpush1.bf16.msra.mxu0 0
  %1392 = vmatprep.subr.bf16.mxu0 0
  %1393 = vmatpush1.bf16.msra.mxu0 0
  %1394 = vmatprep.subr.bf16.mxu0 0
  %1395 = vmatpush1.bf16.msra.mxu0 0
  %1396 = vmatprep.subr.bf16.mxu0 0
  %1397 = vmatpush1.bf16.msra.mxu0 0
  %1398 = vmatprep.subr.bf16.mxu0 0
  %1399 = vmatpush1.bf16.msra.mxu0 0
  %1400 = vmatprep.subr.bf16.mxu0 0
  %1401 = vmatpush1.bf16.msra.mxu0 0
  %1402 = vmatprep.mubr.bf16.mxu0 0
  %1403 = vmatmul.mubr.bf16.gmra.mrb[0].mxu0 %v1368
  %v1404 = vpop.f32.mrb[0].mxu0
  %v1405 = vadd.f32 0.0, %v1404
  %v1406 = vpop.f32.mrb[0].mxu0
  %v1407 = vpop.f32.mrb[0].mxu0
  %v1408 = vadd.f32 0.0, %v1407
  %v1409 = vpop.f32.mrb[0].mxu0
  %1410 = vdwg.mxu0
  %v1411 = vpack.c.bf16 %v1408, %v1405
  %s1412 = scalar_lea.vmem %s3, 176
  %v1413 = vld [vmem:[%s1412] sm:$0xf]
  %v1414 = vld [vmem:[%s1412 + $0x4] sm:$0xf]
  %v1415 = vld [vmem:[%s1412 + $0x8] sm:$0xf]
  %v1416 = vld [vmem:[%s1412 + $0xc] sm:$0xf]
  %s1417 = scalar_lea.vmem %s3, 192
  %v1418 = vld [vmem:[%s1417] sm:$0xf]
  %v1419 = vld [vmem:[%s1417 + $0x4] sm:$0xf]
  %v1420 = vld [vmem:[%s1417 + $0x8] sm:$0xf]
  %v1421 = vld [vmem:[%s1417 + $0xc] sm:$0xf]
  %v1422 = vld [vmem:[%s5 + $0x12] sm:$0x1]
  %v1423 = vlaneseq
  %v1424 = vshrl.u32 %v1423, 7
  %v1425 = vsub.s32 0, %v1424
  %v1426 = vrot.slane %v1422, %v1425
  %v1431 = vunpack.c.l.b16 %v1418
  %v1432 = vunpack.c.l.b16 %v1419
  %v1433 = vunpack.c.l.b16 %v1420
  %v1434 = vunpack.c.l.b16 %v1421
  %v1435 = vpack.c.b16 %v1432, %v1431
  %v1436 = vpack.c.b16 %v1434, %v1433
  %1439 = vmatprep.subr.bf16.mxu0 0
  %1440 = vmatpush1.bf16.msra.mxu0 %v1435
  %1441 = vmatprep.subr.bf16.mxu0 0
  %1442 = vmatpush1.bf16.msra.mxu0 %v1436
  %1443 = vmatprep.subr.bf16.mxu0 0
  %1444 = vmatpush1.bf16.msra.mxu0 0
  %1445 = vmatprep.subr.bf16.mxu0 0
  %1446 = vmatpush1.bf16.msra.mxu0 0
  %1447 = vmatprep.subr.bf16.mxu0 0
  %1448 = vmatpush1.bf16.msra.mxu0 0
  %1449 = vmatprep.subr.bf16.mxu0 0
  %1450 = vmatpush1.bf16.msra.mxu0 0
  %1451 = vmatprep.subr.bf16.mxu0 0
  %1452 = vmatpush1.bf16.msra.mxu0 0
  %1453 = vmatprep.subr.bf16.mxu0 0
  %1454 = vmatpush1.bf16.msra.mxu0 0
  %1455 = vmatprep.subr.bf16.mxu0 0
  %1456 = vmatpush1.bf16.msra.mxu0 0
  %1457 = vmatprep.subr.bf16.mxu0 0
  %1458 = vmatpush1.bf16.msra.mxu0 0
  %1459 = vmatprep.subr.bf16.mxu0 0
  %1460 = vmatpush1.bf16.msra.mxu0 0
  %1461 = vmatprep.subr.bf16.mxu0 0
  %1462 = vmatpush1.bf16.msra.mxu0 0
  %1463 = vmatprep.subr.bf16.mxu0 0
  %1464 = vmatpush1.bf16.msra.mxu0 0
  %1465 = vmatprep.subr.bf16.mxu0 0
  %1466 = vmatpush1.bf16.msra.mxu0 0
  %1467 = vmatprep.subr.bf16.mxu0 0
  %1468 = vmatpush1.bf16.msra.mxu0 0
  %1469 = vmatprep.subr.bf16.mxu0 0
  %1470 = vmatpush1.bf16.msra.mxu0 0
  %1471 = vmatprep.mubr.bf16.mxu0 0
  %1472 = vmatmul.mubr.bf16.gmra.mrb[0].mxu0 %v1125
  %v1473 = vpop.f32.mrb[0].mxu0
  %v1474 = vadd.f32 %v1426, %v1473
  %v1475 = vpop.f32.mrb[0].mxu0
  %v1476 = vpop.f32.mrb[0].mxu0
  %v1477 = vadd.f32 %v1426, %v1476
  %v1478 = vpop.f32.mrb[0].mxu0
  %1479 = vdwg.mxu0
  %s1480 = scalar_lea.vmem %s3, 208
  %v1481 = vld [vmem:[%s1480] sm:$0xf]
  %v1482 = vld [vmem:[%s1480 + $0x4] sm:$0xf]
  %v1483 = vld [vmem:[%s1480 + $0x8] sm:$0xf]
  %v1484 = vld [vmem:[%s1480 + $0xc] sm:$0xf]
  %v1485 = vld [vmem:[%s5 + $0x13] sm:$0x1]
  %v1486 = vlaneseq
  %v1487 = vshrl.u32 %v1486, 7
  %v1488 = vsub.s32 0, %v1487
  %v1489 = vrot.slane %v1485, %v1488
  %v1494 = vunpack.c.l.b16 %v1481
  %v1495 = vunpack.c.l.b16 %v1482
  %v1496 = vunpack.c.l.b16 %v1483
  %v1497 = vunpack.c.l.b16 %v1484
  %v1498 = vpack.c.b16 %v1495, %v1494
  %v1499 = vpack.c.b16 %v1497, %v1496
  %1502 = vmatprep.subr.bf16.mxu0 0
  %1503 = vmatpush1.bf16.msra.mxu0 %v1498
  %1504 = vmatprep.subr.bf16.mxu0 0
  %1505 = vmatpush1.bf16.msra.mxu0 %v1499
  %1506 = vmatprep.subr.bf16.mxu0 0
  %1507 = vmatpush1.bf16.msra.mxu0 0
  %1508 = vmatprep.subr.bf16.mxu0 0
  %1509 = vmatpush1.bf16.msra.mxu0 0
  %1510 = vmatprep.subr.bf16.mxu0 0
  %1511 = vmatpush1.bf16.msra.mxu0 0
  %1512 = vmatprep.subr.bf16.mxu0 0
  %1513 = vmatpush1.bf16.msra.mxu0 0
  %1514 = vmatprep.subr.bf16.mxu0 0
  %1515 = vmatpush1.bf16.msra.mxu0 0
  %1516 = vmatprep.subr.bf16.mxu0 0
  %1517 = vmatpush1.bf16.msra.mxu0 0
  %1518 = vmatprep.subr.bf16.mxu0 0
  %1519 = vmatpush1.bf16.msra.mxu0 0
  %1520 = vmatprep.subr.bf16.mxu0 0
  %1521 = vmatpush1.bf16.msra.mxu0 0
  %1522 = vmatprep.subr.bf16.mxu0 0
  %1523 = vmatpush1.bf16.msra.mxu0 0
  %1524 = vmatprep.subr.bf16.mxu0 0
  %1525 = vmatpush1.bf16.msra.mxu0 0
  %1526 = vmatprep.subr.bf16.mxu0 0
  %1527 = vmatpush1.bf16.msra.mxu0 0
  %1528 = vmatprep.subr.bf16.mxu0 0
  %1529 = vmatpush1.bf16.msra.mxu0 0
  %1530 = vmatprep.subr.bf16.mxu0 0
  %1531 = vmatpush1.bf16.msra.mxu0 0
  %1532 = vmatprep.subr.bf16.mxu0 0
  %1533 = vmatpush1.bf16.msra.mxu0 0
  %1534 = vmatprep.mubr.bf16.mxu0 0
  %1535 = vmatmul.mubr.bf16.gmra.mrb[0].mxu0 %v1125
  %v1536 = vpop.f32.mrb[0].mxu0
  %v1537 = vadd.f32 %v1489, %v1536
  %v1538 = vpop.f32.mrb[0].mxu0
  %v1539 = vpop.f32.mrb[0].mxu0
  %v1540 = vadd.f32 %v1489, %v1539
  %v1541 = vpop.f32.mrb[0].mxu0
  %1542 = vdwg.mxu0
  %s1543 = scalar_lea.vmem %s3, 224
  %v1544 = vld [vmem:[%s1543] sm:$0xf]
  %v1545 = vld [vmem:[%s1543 + $0x4] sm:$0xf]
  %v1546 = vld [vmem:[%s1543 + $0x8] sm:$0xf]
  %v1547 = vld [vmem:[%s1543 + $0xc] sm:$0xf]
  %v1548 = vld [vmem:[%s5 + $0x14] sm:$0x1]
  %v1549 = vlaneseq
  %v1550 = vshrl.u32 %v1549, 7
  %v1551 = vsub.s32 0, %v1550
  %v1552 = vrot.slane %v1548, %v1551
  %v1557 = vunpack.c.l.b16 %v1544
  %v1558 = vunpack.c.l.b16 %v1545
  %v1559 = vunpack.c.l.b16 %v1546
  %v1560 = vunpack.c.l.b16 %v1547
  %v1561 = vpack.c.b16 %v1558, %v1557
  %v1562 = vpack.c.b16 %v1560, %v1559
  %1565 = vmatprep.subr.bf16.mxu0 0
  %1566 = vmatpush1.bf16.msra.mxu0 %v1561
  %1567 = vmatprep.subr.bf16.mxu0 0
  %1568 = vmatpush1.bf16.msra.mxu0 %v1562
  %1569 = vmatprep.subr.bf16.mxu0 0
  %1570 = vmatpush1.bf16.msra.mxu0 0
  %1571 = vmatprep.subr.bf16.mxu0 0
  %1572 = vmatpush1.bf16.msra.mxu0 0
  %1573 = vmatprep.subr.bf16.mxu0 0
  %1574 = vmatpush1.bf16.msra.mxu0 0
  %1575 = vmatprep.subr.bf16.mxu0 0
  %1576 = vmatpush1.bf16.msra.mxu0 0
  %1577 = vmatprep.subr.bf16.mxu0 0
  %1578 = vmatpush1.bf16.msra.mxu0 0
  %1579 = vmatprep.subr.bf16.mxu0 0
  %1580 = vmatpush1.bf16.msra.mxu0 0
  %1581 = vmatprep.subr.bf16.mxu0 0
  %1582 = vmatpush1.bf16.msra.mxu0 0
  %1583 = vmatprep.subr.bf16.mxu0 0
  %1584 = vmatpush1.bf16.msra.mxu0 0
  %1585 = vmatprep.subr.bf16.mxu0 0
  %1586 = vmatpush1.bf16.msra.mxu0 0
  %1587 = vmatprep.subr.bf16.mxu0 0
  %1588 = vmatpush1.bf16.msra.mxu0 0
  %1589 = vmatprep.subr.bf16.mxu0 0
  %1590 = vmatpush1.bf16.msra.mxu0 0
  %1591 = vmatprep.subr.bf16.mxu0 0
  %1592 = vmatpush1.bf16.msra.mxu0 0
  %1593 = vmatprep.subr.bf16.mxu0 0
  %1594 = vmatpush1.bf16.msra.mxu0 0
  %1595 = vmatprep.subr.bf16.mxu0 0
  %1596 = vmatpush1.bf16.msra.mxu0 0
  %1597 = vmatprep.mubr.bf16.mxu0 0
  %1598 = vmatmul.mubr.bf16.gmra.mrb[0].mxu0 %v1125
  %v1599 = vpop.f32.mrb[0].mxu0
  %v1600 = vadd.f32 %v1552, %v1599
  %v1601 = vpop.f32.mrb[0].mxu0
  %v1602 = vpop.f32.mrb[0].mxu0
  %v1603 = vadd.f32 %v1552, %v1602
  %v1604 = vpop.f32.mrb[0].mxu0
  %1605 = vdwg.mxu0
  %v1606 = vpack.c.bf16 %v1477, %v1474
  %v1607 = vpack.c.bf16 %v1540, %v1537
  %v1609 = vsel %vm264, %v1606, 0
  %v1612 = vsel %vm264, %v1607, 0
  %1614 = vmatprep.subr.bf16.mxu0 0
  %1615 = vmatpush1.bf16.xpose.msra.mxu0 %v1612
  %1616 = vmatprep.subr.bf16.mxu0 0
  %1617 = vmatpush1.bf16.xpose.msra.mxu0 0
  %1618 = vmatprep.subr.bf16.mxu0 0
  %1619 = vmatpush1.bf16.xpose.msra.mxu0 0
  %1620 = vmatprep.subr.bf16.mxu0 0
  %1621 = vmatpush1.bf16.xpose.msra.mxu0 0
  %1622 = vmatprep.subr.bf16.mxu0 0
  %1623 = vmatpush1.bf16.xpose.msra.mxu0 0
  %1624 = vmatprep.subr.bf16.mxu0 0
  %1625 = vmatpush1.bf16.xpose.msra.mxu0 0
  %1626 = vmatprep.subr.bf16.mxu0 0
  %1627 = vmatpush1.bf16.xpose.msra.mxu0 0
  %1628 = vmatprep.subr.bf16.mxu0 0
  %1629 = vmatpush1.bf16.xpose.msra.mxu0 0
  %1630 = vmatprep.subr.bf16.mxu0 0
  %1631 = vmatpush1.bf16.xpose.msra.mxu0 0
  %1632 = vmatprep.subr.bf16.mxu0 0
  %1633 = vmatpush1.bf16.xpose.msra.mxu0 0
  %1634 = vmatprep.subr.bf16.mxu0 0
  %1635 = vmatpush1.bf16.xpose.msra.mxu0 0
  %1636 = vmatprep.subr.bf16.mxu0 0
  %1637 = vmatpush1.bf16.xpose.msra.mxu0 0
  %1638 = vmatprep.subr.bf16.mxu0 0
  %1639 = vmatpush1.bf16.xpose.msra.mxu0 0
  %1640 = vmatprep.subr.bf16.mxu0 0
  %1641 = vmatpush1.bf16.xpose.msra.mxu0 0
  %1642 = vmatprep.subr.bf16.mxu0 0
  %1643 = vmatpush1.bf16.xpose.msra.mxu0 0
  %1644 = vmatprep.subr.bf16.mxu0 0
  %1645 = vmatpush1.bf16.xpose.msra.mxu0 0
  %1646 = vmatprep.mubr.bf16.mxu0 0
  %1647 = vmatmul.mubr.bf16.gmra.mrb[0].mxu0 %v1609
  %v1648 = vpop.f32.mrb[0].mxu0
  %v1649 = vadd.f32 %v68, %v1648
  %v1650 = vpop.f32.mrb[0].mxu0
  %v1651 = vpop.f32.mrb[0].mxu0
  %v1652 = vadd.f32 %v69, %v1651
  %v1653 = vpop.f32.mrb[0].mxu0
  %1654 = vdwg.mxu0
  %v1655 = vsel %vm264, %v1649, -inf
  %1656 = vmax.xlane.f32.xlu0 %v1655
  %v1657 = vpop.xlane.xlu0 %1656
  %v1658 = vsel %vm264, %v1652, -inf
  %1659 = vmax.xlane.f32.xlu0 %v1658
  %v1660 = vpop.xlane.xlu0 %1659
  %v1661 = vsub.f32 %v1649, %v1657
  %v1662 = vsub.f32 %v1652, %v1660
  %v1663 = vmul.f32 %v1661, 1.442695
  %v1664 = vpow.pop %v1663
  %v1665 = vmul.f32 %v1662, 1.442695
  %v1666 = vpow.pop %v1665
  %v1667 = vsel %vm264, %v1664, 0.0
  %1668 = vadd.xlane.f32.xlu0 %v1667
  %v1669 = vpop.xlane.xlu0 %1668
  %v1670 = vsel %vm264, %v1666, 0.0
  %1671 = vadd.xlane.f32.xlu0 %v1670
  %v1672 = vpop.xlane.xlu0 %1671
  %v1673 = vrcp.pop %v1669
  %v1674 = vrcp.pop %v1672
  %v1675 = vmul.f32 %v1664, %v1673
  %v1676 = vmul.f32 %v1666, %v1674
  %v1677 = vpack.c.bf16 %v1676, %v1675
  %v1678 = vpack.c.bf16 %v1603, %v1600
  %v1680 = vsel %vm264, %v1677, 0
  %1682 = vmatprep.subr.bf16.mxu0 0
  %1683 = vmatpush1.bf16.msra.mxu0 %v1678
  %1684 = vmatprep.subr.bf16.mxu0 0
  %1685 = vmatpush1.bf16.msra.mxu0 0
  %1686 = vmatprep.subr.bf16.mxu0 0
  %1687 = vmatpush1.bf16.msra.mxu0 0
  %1688 = vmatprep.subr.bf16.mxu0 0
  %1689 = vmatpush1.bf16.msra.mxu0 0
  %1690 = vmatprep.subr.bf16.mxu0 0
  %1691 = vmatpush1.bf16.msra.mxu0 0
  %1692 = vmatprep.subr.bf16.mxu0 0
  %1693 = vmatpush1.bf16.msra.mxu0 0
  %1694 = vmatprep.subr.bf16.mxu0 0
  %1695 = vmatpush1.bf16.msra.mxu0 0
  %1696 = vmatprep.subr.bf16.mxu0 0
  %1697 = vmatpush1.bf16.msra.mxu0 0
  %1698 = vmatprep.subr.bf16.mxu0 0
  %1699 = vmatpush1.bf16.msra.mxu0 0
  %1700 = vmatprep.subr.bf16.mxu0 0
  %1701 = vmatpush1.bf16.msra.mxu0 0
  %1702 = vmatprep.subr.bf16.mxu0 0
  %1703 = vmatpush1.bf16.msra.mxu0 0
  %1704 = vmatprep.subr.bf16.mxu0 0
  %1705 = vmatpush1.bf16.msra.mxu0 0
  %1706 = vmatprep.subr.bf16.mxu0 0
  %1707 = vmatpush1.bf16.msra.mxu0 0
  %1708 = vmatprep.subr.bf16.mxu0 0
  %1709 = vmatpush1.bf16.msra.mxu0 0
  %1710 = vmatprep.subr.bf16.mxu0 0
  %1711 = vmatpush1.bf16.msra.mxu0 0
  %1712 = vmatprep.subr.bf16.mxu0 0
  %1713 = vmatpush1.bf16.msra.mxu0 0
  %1714 = vmatprep.mubr.bf16.mxu0 0
  %1715 = vmatmul.mubr.bf16.gmra.mrb[0].mxu0 %v1680
  %v1716 = vpop.f32.mrb[0].mxu0
  %v1717 = vadd.f32 0.0, %v1716
  %v1718 = vpop.f32.mrb[0].mxu0
  %v1719 = vpop.f32.mrb[0].mxu0
  %v1720 = vadd.f32 0.0, %v1719
  %v1721 = vpop.f32.mrb[0].mxu0
  %1722 = vdwg.mxu0
  %v1723 = vpack.c.bf16 %v1720, %v1717
  %s1724 = scalar_lea.vmem %s3, 240
  %v1725 = vld [vmem:[%s1724] sm:$0xf]
  %v1726 = vld [vmem:[%s1724 + $0x4] sm:$0xf]
  %v1727 = vld [vmem:[%s1724 + $0x8] sm:$0xf]
  %v1728 = vld [vmem:[%s1724 + $0xc] sm:$0xf]
  %v1733 = vunpack.c.l.b16 %v1725
  %v1734 = vunpack.c.l.b16 %v1726
  %v1735 = vunpack.c.l.b16 %v1727
  %v1736 = vunpack.c.l.b16 %v1728
  %v1737 = vpack.c.b16 %v1734, %v1733
  %v1738 = vpack.c.b16 %v1736, %v1735
  %v1740 = vsel %vm264, %v1723, 0
  %v1743 = vsel %vm264, %v1737, 0
  %v1746 = vsel %vm264, %v1738, 0
  %1748 = vmatprep.subr.bf16.mxu0 0
  %1749 = vmatpush1.bf16.xpose.msra.mxu0 %v1743
  %1750 = vmatprep.subr.bf16.mxu0 0
  %1751 = vmatpush1.bf16.xpose.msra.mxu0 %v1746
  %1752 = vmatprep.subr.bf16.mxu0 0
  %1753 = vmatpush1.bf16.xpose.msra.mxu0 0
  %1754 = vmatprep.subr.bf16.mxu0 0
  %1755 = vmatpush1.bf16.xpose.msra.mxu0 0
  %1756 = vmatprep.subr.bf16.mxu0 0
  %1757 = vmatpush1.bf16.xpose.msra.mxu0 0
  %1758 = vmatprep.subr.bf16.mxu0 0
  %1759 = vmatpush1.bf16.xpose.msra.mxu0 0
  %1760 = vmatprep.subr.bf16.mxu0 0
  %1761 = vmatpush1.bf16.xpose.msra.mxu0 0
  %1762 = vmatprep.subr.bf16.mxu0 0
  %1763 = vmatpush1.bf16.xpose.msra.mxu0 0
  %1764 = vmatprep.subr.bf16.mxu0 0
  %1765 = vmatpush1.bf16.xpose.msra.mxu0 0
  %1766 = vmatprep.subr.bf16.mxu0 0
  %1767 = vmatpush1.bf16.xpose.msra.mxu0 0
  %1768 = vmatprep.subr.bf16.mxu0 0
  %1769 = vmatpush1.bf16.xpose.msra.mxu0 0
  %1770 = vmatprep.subr.bf16.mxu0 0
  %1771 = vmatpush1.bf16.xpose.msra.mxu0 0
  %1772 = vmatprep.subr.bf16.mxu0 0
  %1773 = vmatpush1.bf16.xpose.msra.mxu0 0
  %1774 = vmatprep.subr.bf16.mxu0 0
  %1775 = vmatpush1.bf16.xpose.msra.mxu0 0
  %1776 = vmatprep.subr.bf16.mxu0 0
  %1777 = vmatpush1.bf16.xpose.msra.mxu0 0
  %1778 = vmatprep.subr.bf16.mxu0 0
  %1779 = vmatpush1.bf16.xpose.msra.mxu0 0
  %1780 = vmatprep.mubr.bf16.mxu0 0
  %1781 = vmatmul.mubr.bf16.gmra.mrb[0].mxu0 %v1740
  %v1782 = vpop.f32.mrb[0].mxu0
  %v1783 = vadd.f32 0.0, %v1782
  %v1784 = vpop.f32.mrb[0].mxu0
  %v1785 = vpop.f32.mrb[0].mxu0
  %v1786 = vadd.f32 0.0, %v1785
  %v1787 = vpop.f32.mrb[0].mxu0
  %1788 = vdwg.mxu0
  %v1793 = vunpack.c.l.b16 %v1413
  %v1794 = vunpack.c.l.b16 %v1414
  %v1795 = vunpack.c.l.b16 %v1415
  %v1796 = vunpack.c.l.b16 %v1416
  %v1797 = vpack.c.b16 %v1794, %v1793
  %v1798 = vpack.c.b16 %v1796, %v1795
  %v1800 = vsel %vm264, %v1411, 0
  %v1803 = vsel %vm264, %v1797, 0
  %v1806 = vsel %vm264, %v1798, 0
  %1808 = vmatprep.subr.bf16.mxu0 0
  %1809 = vmatpush1.bf16.xpose.msra.mxu0 %v1803
  %1810 = vmatprep.subr.bf16.mxu0 0
  %1811 = vmatpush1.bf16.xpose.msra.mxu0 %v1806
  %1812 = vmatprep.subr.bf16.mxu0 0
  %1813 = vmatpush1.bf16.xpose.msra.mxu0 0
  %1814 = vmatprep.subr.bf16.mxu0 0
  %1815 = vmatpush1.bf16.xpose.msra.mxu0 0
  %1816 = vmatprep.subr.bf16.mxu0 0
  %1817 = vmatpush1.bf16.xpose.msra.mxu0 0
  %1818 = vmatprep.subr.bf16.mxu0 0
  %1819 = vmatpush1.bf16.xpose.msra.mxu0 0
  %1820 = vmatprep.subr.bf16.mxu0 0
  %1821 = vmatpush1.bf16.xpose.msra.mxu0 0
  %1822 = vmatprep.subr.bf16.mxu0 0
  %1823 = vmatpush1.bf16.xpose.msra.mxu0 0
  %1824 = vmatprep.subr.bf16.mxu0 0
  %1825 = vmatpush1.bf16.xpose.msra.mxu0 0
  %1826 = vmatprep.subr.bf16.mxu0 0
  %1827 = vmatpush1.bf16.xpose.msra.mxu0 0
  %1828 = vmatprep.subr.bf16.mxu0 0
  %1829 = vmatpush1.bf16.xpose.msra.mxu0 0
  %1830 = vmatprep.subr.bf16.mxu0 0
  %1831 = vmatpush1.bf16.xpose.msra.mxu0 0
  %1832 = vmatprep.subr.bf16.mxu0 0
  %1833 = vmatpush1.bf16.xpose.msra.mxu0 0
  %1834 = vmatprep.subr.bf16.mxu0 0
  %1835 = vmatpush1.bf16.xpose.msra.mxu0 0
  %1836 = vmatprep.subr.bf16.mxu0 0
  %1837 = vmatpush1.bf16.xpose.msra.mxu0 0
  %1838 = vmatprep.subr.bf16.mxu0 0
  %1839 = vmatpush1.bf16.xpose.msra.mxu0 0
  %1840 = vmatprep.mubr.bf16.mxu0 0
  %1841 = vmatmul.mubr.bf16.gmra.mrb[0].mxu0 %v1800
  %v1842 = vpop.f32.mrb[0].mxu0
  %v1843 = vadd.f32 %v1783, %v1842
  %v1844 = vpop.f32.mrb[0].mxu0
  %v1845 = vpop.f32.mrb[0].mxu0
  %v1846 = vadd.f32 %v1786, %v1845
  %v1847 = vpop.f32.mrb[0].mxu0
  %1848 = vdwg.mxu0
  %v1849 = vld [vmem:[%s5 + $0x15] sm:$0x1]
  %v1850 = vlaneseq
  %v1851 = vshrl.u32 %v1850, 7
  %v1852 = vsub.s32 0, %v1851
  %v1853 = vrot.slane %v1849, %v1852
  %v1854 = vadd.f32 %v1843, %v1853
  %v1855 = vadd.f32 %v1846, %v1853
  %v1856 = vadd.f32 %v1854, %v1099
  %v1857 = vadd.f32 %v1855, %v1100
  %v1858 = vld [vmem:[%s5 + $0x16] sm:$0x1]
  %v1859 = vld [vmem:[%s5 + $0x17] sm:$0x1]
  %v1860 = vsel %vm28, %v1856, 0.0
  %1861 = vadd.xlane.f32.xlu0 %v1860
  %v1862 = vpop.xlane.xlu0 %1861
  %v1863 = vsel %vm28, %v1857, 0.0
  %1864 = vadd.xlane.f32.xlu0 %v1863
  %v1865 = vpop.xlane.xlu0 %1864
  %v1866 = vmul.f32 %v1862, %v35
  %v1867 = vmul.f32 %v1865, %v35
  %v1868 = vsub.f32 %v1856, %v1866
  %v1869 = vsub.f32 %v1857, %v1867
  %v1870 = vmul.f32 %v1868, %v1868
  %v1871 = vmul.f32 %v1869, %v1869
  %v1872 = vsel %vm28, %v1870, 0.0
  %1873 = vadd.xlane.f32.xlu0 %v1872
  %v1874 = vpop.xlane.xlu0 %1873
  %v1875 = vsel %vm28, %v1871, 0.0
  %1876 = vadd.xlane.f32.xlu0 %v1875
  %v1877 = vpop.xlane.xlu0 %1876
  %v1878 = vmul.f32 %v1874, %v35
  %v1879 = vmul.f32 %v1877, %v35
  %v1880 = vadd.f32 %v1878, 1e-12
  %v1881 = vadd.f32 %v1879, 1e-12
  %v1882 = vrsqrt.pop %v1880
  %v1883 = vrsqrt.pop %v1881
  %v1884 = vmul.f32 %v1868, %v1882
  %v1885 = vmul.f32 %v1869, %v1883
  %v1886 = vlaneseq
  %v1887 = vshrl.u32 %v1886, 7
  %v1888 = vsub.s32 0, %v1887
  %v1889 = vrot.slane %v1858, %v1888
  %v1890 = vmul.f32 %v1884, %v1889
  %v1891 = vmul.f32 %v1885, %v1889
  %v1892 = vlaneseq
  %v1893 = vshrl.u32 %v1892, 7
  %v1894 = vsub.s32 0, %v1893
  %v1895 = vrot.slane %v1859, %v1894
  %v1896 = vadd.f32 %v1890, %v1895
  %v1897 = vadd.f32 %v1891, %v1895
  %v1898 = vpack.c.bf16 %v1897, %v1896
  %s1899 = scalar_lea.vmem %s4, 64
  %v1900 = vld [vmem:[%s1899] sm:$0xf]
  %v1901 = vld [vmem:[%s1899 + $0x4] sm:$0xf]
  %v1902 = vld [vmem:[%s1899 + $0x8] sm:$0xf]
  %v1903 = vld [vmem:[%s1899 + $0xc] sm:$0xf]
  %v1904 = vld [vmem:[%s1899 + $0x10] sm:$0xf]
  %v1905 = vld [vmem:[%s1899 + $0x14] sm:$0xf]
  %v1906 = vld [vmem:[%s1899 + $0x18] sm:$0xf]
  %v1907 = vld [vmem:[%s1899 + $0x1c] sm:$0xf]
  %v1908 = vld [vmem:[%s5 + $0x18] sm:$0x1]
  %v1909 = vlaneseq
  %v1910 = vshrl.u32 %v1909, 7
  %v1911 = vsub.s32 0, %v1910
  %v1912 = vrot.slane %v1908, %v1911
  %v1921 = vunpack.c.l.b16 %v1900
  %v1922 = vunpack.c.l.b16 %v1901
  %v1923 = vunpack.c.l.b16 %v1902
  %v1924 = vunpack.c.l.b16 %v1903
  %v1925 = vunpack.c.l.b16 %v1904
  %v1926 = vunpack.c.l.b16 %v1905
  %v1927 = vunpack.c.l.b16 %v1906
  %v1928 = vunpack.c.l.b16 %v1907
  %v1929 = vpack.c.b16 %v1922, %v1921
  %v1930 = vpack.c.b16 %v1924, %v1923
  %v1931 = vpack.c.b16 %v1926, %v1925
  %v1932 = vpack.c.b16 %v1928, %v1927
  %v1934 = vsel %vm28, %v1898, 0
  %v1937 = vsel %vm28, %v1929, 0
  %v1940 = vsel %vm28, %v1930, 0
  %v1943 = vsel %vm28, %v1931, 0
  %v1946 = vsel %vm28, %v1932, 0
  %1948 = vmatprep.subr.bf16.mxu0 0
  %1949 = vmatpush1.bf16.xpose.msra.mxu0 %v1937
  %1950 = vmatprep.subr.bf16.mxu0 0
  %1951 = vmatpush1.bf16.xpose.msra.mxu0 %v1940
  %1952 = vmatprep.subr.bf16.mxu0 0
  %1953 = vmatpush1.bf16.xpose.msra.mxu0 %v1943
  %1954 = vmatprep.subr.bf16.mxu0 0
  %1955 = vmatpush1.bf16.xpose.msra.mxu0 %v1946
  %1956 = vmatprep.subr.bf16.mxu0 0
  %1957 = vmatpush1.bf16.xpose.msra.mxu0 0
  %1958 = vmatprep.subr.bf16.mxu0 0
  %1959 = vmatpush1.bf16.xpose.msra.mxu0 0
  %1960 = vmatprep.subr.bf16.mxu0 0
  %1961 = vmatpush1.bf16.xpose.msra.mxu0 0
  %1962 = vmatprep.subr.bf16.mxu0 0
  %1963 = vmatpush1.bf16.xpose.msra.mxu0 0
  %1964 = vmatprep.subr.bf16.mxu0 0
  %1965 = vmatpush1.bf16.xpose.msra.mxu0 0
  %1966 = vmatprep.subr.bf16.mxu0 0
  %1967 = vmatpush1.bf16.xpose.msra.mxu0 0
  %1968 = vmatprep.subr.bf16.mxu0 0
  %1969 = vmatpush1.bf16.xpose.msra.mxu0 0
  %1970 = vmatprep.subr.bf16.mxu0 0
  %1971 = vmatpush1.bf16.xpose.msra.mxu0 0
  %1972 = vmatprep.subr.bf16.mxu0 0
  %1973 = vmatpush1.bf16.xpose.msra.mxu0 0
  %1974 = vmatprep.subr.bf16.mxu0 0
  %1975 = vmatpush1.bf16.xpose.msra.mxu0 0
  %1976 = vmatprep.subr.bf16.mxu0 0
  %1977 = vmatpush1.bf16.xpose.msra.mxu0 0
  %1978 = vmatprep.subr.bf16.mxu0 0
  %1979 = vmatpush1.bf16.xpose.msra.mxu0 0
  %1980 = vmatprep.mubr.bf16.mxu0 0
  %1981 = vmatmul.mubr.bf16.gmra.mrb[0].mxu0 %v1934
  %v1982 = vpop.f32.mrb[0].mxu0
  %v1983 = vadd.f32 %v1912, %v1982
  %v1984 = vpop.f32.mrb[0].mxu0
  %v1985 = vpop.f32.mrb[0].mxu0
  %v1986 = vadd.f32 %v1912, %v1985
  %v1987 = vpop.f32.mrb[0].mxu0
  %1988 = vdwg.mxu0
  %v1989 = vmul.f32 %v1983, 0.5
  %v1990 = vmul.f32 %v1986, 0.5
  %v1991 = vmul.f32 %v1983, 0.044715
  %v1992 = vmul.f32 %v1986, 0.044715
  %v1993 = vmul.f32 %v1991, %v1983
  %v1994 = vmul.f32 %v1992, %v1986
  %v1995 = vmul.f32 %v1993, %v1983
  %v1996 = vmul.f32 %v1994, %v1986
  %v1997 = vadd.f32 %v1983, %v1995
  %v1998 = vadd.f32 %v1986, %v1996
  %v1999 = vmul.f32 %v1997, 0.7978846
  %v2000 = vmul.f32 %v1998, 0.7978846
  %v2001 = vtanh.pop %v1999
  %v2002 = vtanh.pop %v2000
  %v2003 = vadd.f32 %v2001, 1.0
  %v2004 = vadd.f32 %v2002, 1.0
  %v2005 = vmul.f32 %v1989, %v2003
  %v2006 = vmul.f32 %v1990, %v2004
  %v2007 = vpack.c.bf16 %v2006, %v2005
  %s2008 = scalar_lea.vmem %s4, 96
  %v2009 = vld [vmem:[%s2008] sm:$0xf]
  %v2010 = vld [vmem:[%s2008 + $0x4] sm:$0xf]
  %v2011 = vld [vmem:[%s2008 + $0x8] sm:$0xf]
  %v2012 = vld [vmem:[%s2008 + $0xc] sm:$0xf]
  %v2013 = vld [vmem:[%s2008 + $0x10] sm:$0xf]
  %v2014 = vld [vmem:[%s2008 + $0x14] sm:$0xf]
  %v2015 = vld [vmem:[%s2008 + $0x18] sm:$0xf]
  %v2016 = vld [vmem:[%s2008 + $0x1c] sm:$0xf]
  %v2017 = vld [vmem:[%s5 + $0x19] sm:$0x1]
  %v2018 = vlaneseq
  %v2019 = vshrl.u32 %v2018, 7
  %v2020 = vsub.s32 0, %v2019
  %v2021 = vrot.slane %v2017, %v2020
  %v2030 = vunpack.c.l.b16 %v2009
  %v2031 = vunpack.c.l.b16 %v2010
  %v2032 = vunpack.c.l.b16 %v2011
  %v2033 = vunpack.c.l.b16 %v2012
  %v2034 = vunpack.c.l.b16 %v2013
  %v2035 = vunpack.c.l.b16 %v2014
  %v2036 = vunpack.c.l.b16 %v2015
  %v2037 = vunpack.c.l.b16 %v2016
  %v2038 = vpack.c.b16 %v2031, %v2030
  %v2039 = vpack.c.b16 %v2033, %v2032
  %v2040 = vpack.c.b16 %v2035, %v2034
  %v2041 = vpack.c.b16 %v2037, %v2036
  %v2047 = vsel %vm1014, %v2007, 0
  %2049 = vmatprep.subr.bf16.mxu0 0
  %2050 = vmatpush1.bf16.msra.mxu0 %v2038
  %2051 = vmatprep.subr.bf16.mxu0 0
  %2052 = vmatpush1.bf16.msra.mxu0 %v2039
  %2053 = vmatprep.subr.bf16.mxu0 0
  %2054 = vmatpush1.bf16.msra.mxu0 %v2040
  %2055 = vmatprep.subr.bf16.mxu0 0
  %2056 = vmatpush1.bf16.msra.mxu0 %v2041
  %2057 = vmatprep.subr.bf16.mxu0 0
  %2058 = vmatpush1.bf16.msra.mxu0 0
  %2059 = vmatprep.subr.bf16.mxu0 0
  %2060 = vmatpush1.bf16.msra.mxu0 0
  %2061 = vmatprep.subr.bf16.mxu0 0
  %2062 = vmatpush1.bf16.msra.mxu0 0
  %2063 = vmatprep.subr.bf16.mxu0 0
  %2064 = vmatpush1.bf16.msra.mxu0 0
  %2065 = vmatprep.subr.bf16.mxu0 0
  %2066 = vmatpush1.bf16.msra.mxu0 0
  %2067 = vmatprep.subr.bf16.mxu0 0
  %2068 = vmatpush1.bf16.msra.mxu0 0
  %2069 = vmatprep.subr.bf16.mxu0 0
  %2070 = vmatpush1.bf16.msra.mxu0 0
  %2071 = vmatprep.subr.bf16.mxu0 0
  %2072 = vmatpush1.bf16.msra.mxu0 0
  %2073 = vmatprep.subr.bf16.mxu0 0
  %2074 = vmatpush1.bf16.msra.mxu0 0
  %2075 = vmatprep.subr.bf16.mxu0 0
  %2076 = vmatpush1.bf16.msra.mxu0 0
  %2077 = vmatprep.subr.bf16.mxu0 0
  %2078 = vmatpush1.bf16.msra.mxu0 0
  %2079 = vmatprep.subr.bf16.mxu0 0
  %2080 = vmatpush1.bf16.msra.mxu0 0
  %2081 = vmatprep.mubr.bf16.mxu0 0
  %2082 = vmatmul.mubr.bf16.gmra.mrb[0].mxu0 %v2047
  %v2083 = vpop.f32.mrb[0].mxu0
  %v2084 = vadd.f32 %v2021, %v2083
  %v2085 = vpop.f32.mrb[0].mxu0
  %v2086 = vpop.f32.mrb[0].mxu0
  %v2087 = vadd.f32 %v2021, %v2086
  %v2088 = vpop.f32.mrb[0].mxu0
  %2089 = vdwg.mxu0
  %v2090 = vadd.f32 %v2084, %v1896
  %v2091 = vadd.f32 %v2087, %v1897
  %v2092 = vld [vmem:[%s5 + $0x1a] sm:$0x1]
  %v2093 = vld [vmem:[%s5 + $0x1b] sm:$0x1]
  %v2094 = vsel %vm28, %v2090, 0.0
  %2095 = vadd.xlane.f32.xlu0 %v2094
  %v2096 = vpop.xlane.xlu0 %2095
  %v2097 = vsel %vm28, %v2091, 0.0
  %2098 = vadd.xlane.f32.xlu0 %v2097
  %v2099 = vpop.xlane.xlu0 %2098
  %v2100 = vmul.f32 %v2096, %v35
  %v2101 = vmul.f32 %v2099, %v35
  %v2102 = vsub.f32 %v2090, %v2100
  %v2103 = vsub.f32 %v2091, %v2101
  %v2104 = vmul.f32 %v2102, %v2102
  %v2105 = vmul.f32 %v2103, %v2103
  %v2106 = vsel %vm28, %v2104, 0.0
  %2107 = vadd.xlane.f32.xlu0 %v2106
  %v2108 = vpop.xlane.xlu0 %2107
  %v2109 = vsel %vm28, %v2105, 0.0
  %2110 = vadd.xlane.f32.xlu0 %v2109
  %v2111 = vpop.xlane.xlu0 %2110
  %v2112 = vmul.f32 %v2108, %v35
  %v2113 = vmul.f32 %v2111, %v35
  %v2114 = vadd.f32 %v2112, 1e-12
  %v2115 = vadd.f32 %v2113, 1e-12
  %v2116 = vrsqrt.pop %v2114
  %v2117 = vrsqrt.pop %v2115
  %v2118 = vmul.f32 %v2102, %v2116
  %v2119 = vmul.f32 %v2103, %v2117
  %v2120 = vlaneseq
  %v2121 = vshrl.u32 %v2120, 7
  %v2122 = vsub.s32 0, %v2121
  %v2123 = vrot.slane %v2092, %v2122
  %v2124 = vmul.f32 %v2118, %v2123
  %v2125 = vmul.f32 %v2119, %v2123
  %v2126 = vlaneseq
  %v2127 = vshrl.u32 %v2126, 7
  %v2128 = vsub.s32 0, %v2127
  %v2129 = vrot.slane %v2093, %v2128
  %v2130 = vadd.f32 %v2124, %v2129
  %v2131 = vadd.f32 %v2125, %v2129
  %v2132 = vld [vmem:[%s2] sm:$0x3]
  %v2134 = vsel %vm264, %v2132, 0
  %2136 = vmatprep.subr.mxu0 0.0
  %2137 = vmatpush1.msra.mxu0 %v2130
  %2138 = vmatprep.subr.mxu0 0.0
  %2139 = vmatpush1.msra.mxu0 %v2131
  %2140 = vmatprep.subr.mxu0 0.0
  %2141 = vmatpush1.msra.mxu0 0.0
  %2142 = vmatprep.subr.mxu0 0.0
  %2143 = vmatpush1.msra.mxu0 0.0
  %2144 = vmatprep.subr.mxu0 0.0
  %2145 = vmatpush1.msra.mxu0 0.0
  %2146 = vmatprep.subr.mxu0 0.0
  %2147 = vmatpush1.msra.mxu0 0.0
  %2148 = vmatprep.subr.mxu0 0.0
  %2149 = vmatpush1.msra.mxu0 0.0
  %2150 = vmatprep.subr.mxu0 0.0
  %2151 = vmatpush1.msra.mxu0 0.0
  %2152 = vmatprep.subr.mxu0 0.0
  %2153 = vmatpush1.msra.mxu0 0.0
  %2154 = vmatprep.subr.mxu0 0.0
  %2155 = vmatpush1.msra.mxu0 0.0
  %2156 = vmatprep.subr.mxu0 0.0
  %2157 = vmatpush1.msra.mxu0 0.0
  %2158 = vmatprep.subr.mxu0 0.0
  %2159 = vmatpush1.msra.mxu0 0.0
  %2160 = vmatprep.subr.mxu0 0.0
  %2161 = vmatpush1.msra.mxu0 0.0
  %2162 = vmatprep.subr.mxu0 0.0
  %2163 = vmatpush1.msra.mxu0 0.0
  %2164 = vmatprep.subr.mxu0 0.0
  %2165 = vmatpush1.msra.mxu0 0.0
  %2166 = vmatprep.subr.mxu0 0.0
  %2167 = vmatpush1.msra.mxu0 0.0
  %2168 = vmatprep.subr.mxu0 0.0
  %2169 = vmatpush1.msra.mxu0 0.0
  %2170 = vmatprep.subr.mxu0 0.0
  %2171 = vmatpush1.msra.mxu0 0.0
  %2172 = vmatprep.subr.mxu0 0.0
  %2173 = vmatpush1.msra.mxu0 0.0
  %2174 = vmatprep.subr.mxu0 0.0
  %2175 = vmatpush1.msra.mxu0 0.0
  %2176 = vmatprep.subr.mxu0 0.0
  %2177 = vmatpush1.msra.mxu0 0.0
  %2178 = vmatprep.subr.mxu0 0.0
  %2179 = vmatpush1.msra.mxu0 0.0
  %2180 = vmatprep.subr.mxu0 0.0
  %2181 = vmatpush1.msra.mxu0 0.0
  %2182 = vmatprep.subr.mxu0 0.0
  %2183 = vmatpush1.msra.mxu0 0.0
  %2184 = vmatprep.subr.mxu0 0.0
  %2185 = vmatpush1.msra.mxu0 0.0
  %2186 = vmatprep.subr.mxu0 0.0
  %2187 = vmatpush1.msra.mxu0 0.0
  %2188 = vmatprep.subr.mxu0 0.0
  %2189 = vmatpush1.msra.mxu0 0.0
  %2190 = vmatprep.subr.mxu0 0.0
  %2191 = vmatpush1.msra.mxu0 0.0
  %2192 = vmatprep.subr.mxu0 0.0
  %2193 = vmatpush1.msra.mxu0 0.0
  %2194 = vmatprep.subr.mxu0 0.0
  %2195 = vmatpush1.msra.mxu0 0.0
  %2196 = vmatprep.subr.mxu0 0.0
  %2197 = vmatpush1.msra.mxu0 0.0
  %2198 = vmatprep.subr.mxu0 0.0
  %2199 = vmatpush1.msra.mxu0 0.0
  %2200 = vmatprep.mubr.f32.mxu0 0.0
  %2201 = vmatmul.mubr.f32.gmra.mrb[0].mxu0 %v2134
  %v2202 = vpop.f32.mrb[0].mxu0
  %v2203 = vadd.f32 0.0, %v2202
  %v2204 = vpop.f32.mrb[0].mxu0
  %2205 = vdwg.mxu0
  %v2206 = vld [vmem:[%s5 + $0x1c] sm:$0x1]
  %v2207 = vlaneseq
  %v2208 = vshrl.u32 %v2207, 7
  %v2209 = vsub.s32 0, %v2208
  %v2210 = vrot.slane %v2206, %v2209
  %v2211 = vmul.f32 %v2203, %v2210
  %vm2212 = vcmask 254976
  %v2213 = vsel %vm2212, %v2211, 0.0
  %2214 = vadd.xlane.f32.xlu0 %v2213
  %v2215 = vpop.xlane.xlu0 %2214
  %v2216 = vld [vmem:[%s5 + $0x1d] sm:$0x1]
  %v2217 = vlaneseq
  %v2218 = vshrl.u32 %v2217, 7
  %v2219 = vsub.s32 0, %v2218
  %v2220 = vrot.slane %v2216, %v2219
  %v2221 = vadd.f32 %v2215, %v2220
  %vm2222 = vcmask 1024
  %2223 = vst.msk [vmem:[%s6] sm:$0x3] %vm2222, %v2221
  // Predicated region
  $region26: #{plm_regressor_forward.1} parent=0 // pred_check
    _
  $region27: #{plm_regressor_forward.1} parent=0 // pred_check_branch
    %2225 = sbr.rel (0) target = $region29
  $region28: #{plm_regressor_forward.1} parent=0 // pred_region
    _
  $region29: #{plm_regressor_forward.1} parent=0 // pred_fallthru
    _
  // Predicated region
  $region30: #{plm_regressor_forward.1} parent=0 // pred_check
    _
  $region31: #{plm_regressor_forward.1} parent=0 // pred_check_branch
    %2227 = sbr.rel (0) target = $region33
  $region32: #{plm_regressor_forward.1} parent=0 // pred_region
    _
  $region33: #{plm_regressor_forward.1} parent=0 // pred_fallthru
    _

</llo_original>
